<compile_context>
chip_gen: v5e
topology: v5e:2x2
jax: 0.10.0
libtpu: 0.0.40
codegen_flags: <defaults>
</compile_context>

<pallas_src>
import functools

import jax
import jax.numpy as jnp
from jax.experimental import pallas as pl
from jax.experimental.pallas import tpu as pltpu


# ----------------------------------------------------------------------------
# Kernel
# ----------------------------------------------------------------------------
def _dmon_kernel(adj_t_ref, x_ref, dinv_ref, deg_ref,
                 w1_ref, b1_ref, w2_ref, b2_ref, w3_ref, b3_ref,
                 st_ref, scal_ref, *, nodes_per_graph, graphs_per_group):
    N = nodes_per_graph
    G = graphs_per_group

    adj_t = adj_t_ref[...]          # [L, L] bf16, block-diag, TRANSPOSED adjacency
    x = x_ref[...]                  # [L, F] f32
    dinv = dinv_ref[...]            # [L, 1] f32  D^{-1/2} of (A + I) per-target degree
    deg = deg_ref[...]              # [L, 1] f32  adj.sum(-1) (no self loops)
    L = adj_t.shape[0]
    C = w3_ref.shape[1]
    a_dt = adj_t.dtype              # bf16 (or f32); dots accumulate in f32 either way

    def propagate(h):
        # A_norm @ h == dinv * ((A + I)^T (dinv * h))
        #           == dinv * (adj_t @ (dinv * h) + dinv * h)
        y = dinv * h                                           # f32 elementwise
        z = jnp.dot(adj_t, y.astype(a_dt),
                    preferred_element_type=jnp.float32) + y
        return dinv * z

    # ---- GCNConv 1: relu(A_norm @ (x @ W1) + b1) ----
    h = jnp.dot(x, w1_ref[...], preferred_element_type=jnp.float32)
    h = jnp.maximum(propagate(h) + b1_ref[...], 0.0)

    # ---- GCNConv 2: relu(A_norm @ (h @ W2) + b2) ----
    h = jnp.dot(h, w2_ref[...], preferred_element_type=jnp.float32)
    h = jnp.maximum(propagate(h) + b2_ref[...], 0.0)

    # ---- DMoNPooling cluster assignment (softmax over clusters) ----
    logits = jnp.dot(h, w3_ref[...], preferred_element_type=jnp.float32) + b3_ref[...]
    logits = logits - jnp.max(logits, axis=-1, keepdims=True)
    e = jnp.exp(logits)
    s = e * pl.reciprocal(jnp.sum(e, axis=-1, keepdims=True), approx=True)  # [L, C]

    # Lane-dense assignment output: store transposed [C, L] (128 lanes).
    st_ref[...] = s.T

    # Per-graph segment indicator: seg[g, i] = 1 iff node i belongs to graph g.
    row = jax.lax.broadcasted_iota(jnp.int32, (G, L), 0)
    col = jax.lax.broadcasted_iota(jnp.int32, (G, L), 1)
    lo = row * N
    seg = jnp.logical_and(col >= lo, col < lo + N).astype(jnp.float32)      # [G, L]

    # ---- Spectral (modularity) loss per graph ----
    # tr(S^T A S) == sum((A^T S) * S); block-diag adjacency keeps graphs separate.
    a_s = jnp.dot(adj_t, s.astype(a_dt), preferred_element_type=jnp.float32)  # [L, C]
    tr_g = jnp.dot(seg, a_s * s, preferred_element_type=jnp.float32)          # [G, C]
    sd_g = jnp.dot(seg, s * deg, preferred_element_type=jnp.float32)          # [G, C] = S^T d
    cs_g = jnp.dot(seg, s, preferred_element_type=jnp.float32)                # [G, C]

    trace_out = jnp.sum(tr_g, axis=-1, keepdims=True)                         # [G, 1]
    # rows of s sum to 1, so sum_c (S^T d)_c == sum of degrees == 2m per graph
    two_m = jnp.sum(sd_g, axis=-1, keepdims=True)                             # [G, 1]
    # exact reciprocal (review item); guard edge-less / padded graph slots
    inv_2m = jnp.where(two_m > 0.0, 1.0 / two_m, 0.0)                         # [G, 1]
    trace_norm = jnp.sum(sd_g * sd_g, axis=-1, keepdims=True) * inv_2m
    spec = (trace_norm - trace_out) * inv_2m                                   # [G, 1]

    # ---- Cluster (collapse) loss per graph ----
    clus = (jnp.sqrt(jnp.sum(cs_g * cs_g, axis=-1, keepdims=True))
            * ((C ** 0.5) / float(N)) - 1.0)                                   # [G, 1]

    spec_v = 100.0 * spec
    clus_v = 100.0 * clus
    loss_v = spec_v + clus_v

    # One packed (G, 8) scalar tile per group: lanes 0/1/2 = loss/spec/clus.
    lane = jax.lax.broadcasted_iota(jnp.int32, (G, 8), 1)
    scal_ref[...] = (jnp.where(lane == 0, loss_v, 0.0)
                     + jnp.where(lane == 1, spec_v, 0.0)
                     + jnp.where(lane == 2, clus_v, 0.0))


# ----------------------------------------------------------------------------
# Wrapper-side glue (edge lists -> dense tensors, block-diagonal packing)
# ----------------------------------------------------------------------------
def _graph_tensors(edge_index, edge_attr, num_nodes):
    """Dense TRANSPOSED adjacency + degree vectors for one graph."""
    N = num_nodes
    w = edge_attr.astype(jnp.float32)
    src, dst = edge_index[0], edge_index[1]
    # to_dense_adj gives adj[src, dst] += w; scatter the TRANSPOSE directly so
    # every in-kernel matmul is in standard contraction orientation.
    adj_t = jnp.zeros((N, N), jnp.float32).at[dst, src].add(w)
    # Degrees for the DMoN spectral loss: adj.sum(-1) (no self loops).
    deg_spec = jnp.zeros((N,), jnp.float32).at[src].add(w)
    # gcn_norm degrees (per target node, self-loop weight 1.0).
    deg_gcn = jnp.zeros((N,), jnp.float32).at[dst].add(w) + 1.0
    dinv = jnp.where(deg_gcn > 0, jax.lax.rsqrt(deg_gcn), 0.0)
    return adj_t, dinv.reshape(N, 1), deg_spec.reshape(N, 1)


def _pack_graphs(graphs, num_nodes, lane_width=128, adj_dtype=jnp.bfloat16):
    """Pack graphs block-diagonally into [n_groups, L, ...] slabs, L = G*N.

    lane_width: target MXU edge (128 everywhere; 256 also fills v6e/v7x MXU).
    Empty padded slots get zero adjacency / features and dinv = 1 (self loop).
    """
    N = num_nodes
    F = graphs[0][2].shape[-1]
    G = max(1, lane_width // N)
    L = G * N
    B = len(graphs)
    n_groups = -(-B // G)
    if n_groups > 1 and n_groups % 2:
        n_groups += 1          # even "parallel" axis -> both v7x TensorCores busy

    adj_t = jnp.zeros((n_groups, L, L), jnp.float32)
    x_p = jnp.zeros((n_groups, L, F), jnp.float32)
    dinv_p = jnp.ones((n_groups, L, 1), jnp.float32)
    deg_p = jnp.zeros((n_groups, L, 1), jnp.float32)
    for j, (ei, ea, xg) in enumerate(graphs):
        grp, off = j // G, (j % G) * N
        a_t, di, dg = _graph_tensors(ei, ea, N)
        adj_t = adj_t.at[grp, off:off + N, off:off + N].set(a_t)
        x_p = x_p.at[grp, off:off + N, :].set(xg.astype(jnp.float32))
        dinv_p = dinv_p.at[grp, off:off + N, :].set(di)
        deg_p = deg_p.at[grp, off:off + N, :].set(dg)
    # bf16 adjacency: halves HBM/DMA bytes and resident VMEM for the dominant
    # LxL operand; all dots keep f32 accumulation in the kernel.
    return adj_t.astype(adj_dtype), x_p, dinv_p, deg_p, G, L, n_groups


# ----------------------------------------------------------------------------
# pallas_call wrapper
# ----------------------------------------------------------------------------
def _dmon_pallas(params, adj_t_p, x_p, dinv_p, deg_p, *, nodes_per_graph,
                 graphs_per_group):
    NB, L, _ = adj_t_p.shape
    F = x_p.shape[-1]
    H = params["w1"].shape[1]
    C = params["w3"].shape[1]
    G = graphs_per_group
    N = nodes_per_graph
    adj_bytes = jnp.dtype(adj_t_p.dtype).itemsize

    flops = NB * (2 * L * L * (2 * H + C) + 2 * L * (F * H + H * H + H * C)
                  + 6 * G * L * C)
    transcendentals = NB * (L * (C + 1) + 4 * G)
    bytes_accessed = (adj_bytes * NB * L * L
                      + 4 * NB * (L * (F + 2) + C * L + G * 8)
                      + 4 * (F * H + H * H + H * C + 2 * H + C))

    # VMEM budget derived from the chip (review item): never below the 32 MiB
    # scoped default, leave ~8 MiB headroom under the physical capacity
    # (~56 MiB usable on v7x, ~120 MiB on v5e/v6e).
    try:
        vmem_cap = pltpu.get_tpu_info().vmem_capacity_bytes
    except Exception:
        vmem_cap = 64 * 2**20
    per_step = adj_bytes * L * L + 4 * (L * (F + 2) + C * L + G * 8)
    weights = 4 * (F * H + H * H + H * C + 2 * H + C)
    interm = 4 * (4 * L * H + 4 * L * C + 4 * G * C)
    needed = 2 * per_step + weights + interm + (2 << 20)
    vmem_limit = int(min(vmem_cap - 8 * 2**20, max(needed, 32 * 2**20)))

    kernel = functools.partial(_dmon_kernel, nodes_per_graph=N,
                               graphs_per_group=G)

    grid_spec = pltpu.PrefetchScalarGridSpec(
        num_scalar_prefetch=0,
        grid=(NB,),
        in_specs=[
            pl.BlockSpec((pl.Squeezed(), L, L), lambda b: (b, 0, 0)),   # adj^T (bf16)
            pl.BlockSpec((pl.Squeezed(), L, F), lambda b: (b, 0, 0)),   # x
            pl.BlockSpec((pl.Squeezed(), L, 1), lambda b: (b, 0, 0)),   # dinv
            pl.BlockSpec((pl.Squeezed(), L, 1), lambda b: (b, 0, 0)),   # deg
            pl.BlockSpec((F, H), lambda b: (0, 0)),                     # w1
            pl.BlockSpec((1, H), lambda b: (0, 0)),                     # b1
            pl.BlockSpec((H, H), lambda b: (0, 0)),                     # w2
            pl.BlockSpec((1, H), lambda b: (0, 0)),                     # b2
            pl.BlockSpec((H, C), lambda b: (0, 0)),                     # w3
            pl.BlockSpec((1, C), lambda b: (0, 0)),                     # b3
        ],
        out_specs=(
            pl.BlockSpec((pl.Squeezed(), C, L), lambda b: (b, 0, 0)),   # s^T lane-dense
            pl.BlockSpec((pl.Squeezed(), G, 8), lambda b: (b, 0, 0)),   # packed scalars
        ),
    )

    st, scal = pl.pallas_call(
        kernel,
        out_shape=(jax.ShapeDtypeStruct((NB, C, L), jnp.float32),
                   jax.ShapeDtypeStruct((NB, G, 8), jnp.float32)),
        grid_spec=grid_spec,
        compiler_params=pltpu.CompilerParams(
            dimension_semantics=("parallel",),
            vmem_limit_bytes=vmem_limit),
        cost_estimate=pl.CostEstimate(flops=int(flops),
                                      transcendentals=int(transcendentals),
                                      bytes_accessed=int(bytes_accessed)),
    )(adj_t_p, x_p, dinv_p, deg_p,
      params["w1"], params["b1"], params["w2"], params["b2"],
      params["w3"], params["b3"])
    return st, scal


def dmon_forward_batch(params, graphs, num_nodes, lane_width=128):
    """Batched DMoN forward over a list of (edge_index, edge_attr, x) graphs."""
    C = params["w3"].shape[1]
    B = len(graphs)
    adj_t_p, x_p, dinv_p, deg_p, G, L, NB = _pack_graphs(
        graphs, num_nodes, lane_width=lane_width)
    st, scal = _dmon_pallas(params, adj_t_p, x_p, dinv_p, deg_p,
                            nodes_per_graph=num_nodes, graphs_per_group=G)
    # Lane-dense [NB, C, L] -> per-graph [B, N, C] (cheap XLA transpose/reshape).
    s = jnp.transpose(st, (0, 2, 1)).reshape(NB * G, num_nodes, C)[:B]
    sc = scal.reshape(NB * G, 8)[:B]
    return s, sc[:, 0], sc[:, 1], sc[:, 2]


def dmon_forward(params, x, edge_index, edge_attributes, num_nodes,
                 lane_width=128):
    """Single-graph forward matching DMoN.forward's returned tuple."""
    s, loss, spec, clus = dmon_forward_batch(
        params, [(edge_index, edge_attributes, x)], num_nodes, lane_width)
    return s, loss[0], spec[0], clus[0]


# ----------------------------------------------------------------------------
# Pure-JAX f32 reference (exact semantics of the PyTorch module forward)
# ----------------------------------------------------------------------------
def _reference(params, x, edge_index, edge_attr, N):
    src, dst = edge_index[0], edge_index[1]
    adj = jnp.zeros((N, N), jnp.float32).at[src, dst].add(edge_attr.astype(jnp.float32))
    a_loop = adj + jnp.eye(N, dtype=jnp.float32)
    deg = a_loop.sum(0)
    dinv = jnp.where(deg > 0, 1.0 / jnp.sqrt(deg), 0.0)
    a_norm = dinv[:, None] * a_loop.T * dinv[None, :]

    h = jax.nn.relu(a_norm @ (x @ params["w1"]) + params["b1"])
    h = jax.nn.relu(a_norm @ (h @ params["w2"]) + params["b2"])
    s = jax.nn.softmax(h @ params["w3"] + params["b3"], axis=-1)

    out_adj = s.T @ adj @ s
    deg_v = adj.sum(-1, keepdims=True)
    m = deg_v.sum() / 2.0
    ca = s.T @ deg_v
    normalizer = (ca @ ca.T) / 2.0 / m
    spectral = -jnp.trace(out_adj - normalizer) / 2.0 / m
    C = s.shape[1]
    csize = s.sum(0)
    cluster = jnp.linalg.norm(csize) / s.shape[0] * jnp.sqrt(jnp.float32(C)) - 1.0
    return (s[None], 100.0 * (spectral + cluster), 100.0 * spectral, 100.0 * cluster)


# ----------------------------------------------------------------------------
# Demo / self-check
# ----------------------------------------------------------------------------
if __name__ == "__main__":
    key = jax.random.PRNGKey(0)
    N, F_in, H, C, B = 16, 8, 32, 4, 16   # 16 graphs -> 2 packed groups of 8

    # Deterministic batch of B small graphs: ring + N random extra edges each.
    graphs = []
    for g in range(B):
        kg1, kg2, kg3, kg4 = jax.random.split(jax.random.fold_in(key, g), 4)
        ring_src = jnp.arange(N, dtype=jnp.int32)
        ring_dst = (ring_src + 1) % N
        extra_src = jax.random.randint(kg1, (N,), 0, N, dtype=jnp.int32)
        extra_off = jax.random.randint(kg2, (N,), 1, N, dtype=jnp.int32)
        extra_dst = (extra_src + extra_off) % N
        edge_index = jnp.stack([jnp.concatenate([ring_src, extra_src]),
                                jnp.concatenate([ring_dst, extra_dst])])
        E = edge_index.shape[1]
        edge_attr = jax.random.uniform(kg3, (E,), minval=0.5, maxval=1.5,
                                       dtype=jnp.float32)
        xg = jax.random.normal(kg4, (N, F_in), dtype=jnp.float32)
        graphs.append((edge_index, edge_attr, xg))

    # Deterministic synthetic parameters (shapes from the module __init__).
    k5, k6, k7, k8 = jax.random.split(jax.random.fold_in(key, 1000), 4)
    params = {
        "w1": 0.3 * jax.random.normal(k5, (F_in, H), dtype=jnp.float32),
        "b1": jnp.zeros((1, H), jnp.float32),
        "w2": 0.3 * jax.random.normal(k6, (H, H), dtype=jnp.float32),
        "b2": jnp.zeros((1, H), jnp.float32),
        "w3": 0.3 * jax.random.normal(k7, (H, C), dtype=jnp.float32),
        "b3": 0.1 * jax.random.normal(k8, (1, C), dtype=jnp.float32),
    }

    # Batched (block-diagonal packed) call: one pallas_call for all graphs.
    s_b, loss_b, spec_b, clus_b = jax.block_until_ready(
        dmon_forward_batch(params, graphs, N))

    # Single-graph module-API call.
    ei0, ea0, x0 = graphs[0]
    s0, loss0, spec0, clus0 = jax.block_until_ready(
        dmon_forward(params, x0, ei0, ea0, N))

    # Verify against the exact f32 pure-JAX reference.  Tolerances account for
    # the bf16 adjacency / bf16 MXU operands and the approximate softmax
    # reciprocal; losses are x100-scaled so they carry the widest bounds.
    assert s_b.shape == (B, N, C)
    assert loss_b.shape == (B,) and spec_b.shape == (B,) and clus_b.shape == (B,)
    for g in range(B):
        ei, ea, xg = graphs[g]
        s_r, loss_r, spec_r, clus_r = _reference(params, xg, ei, ea, N)
        assert bool(jnp.all(jnp.isfinite(s_b[g])))
        assert bool(jnp.allclose(jnp.sum(s_b[g], axis=-1), 1.0, atol=1e-2))
        assert bool(jnp.allclose(s_b[g], s_r[0], atol=2e-2, rtol=2e-2))
        assert bool(jnp.allclose(loss_b[g], loss_r, atol=0.5, rtol=5e-2))
        assert bool(jnp.allclose(spec_b[g], spec_r, atol=0.5, rtol=5e-2))
        assert bool(jnp.allclose(clus_b[g], clus_r, atol=0.5, rtol=5e-2))

    # Single-graph path must agree with the packed-batch path (block-diagonal
    # packing keeps graphs exactly independent).
    assert s0.shape == (1, N, C)
    assert bool(jnp.allclose(s0[0], s_b[0], atol=1e-4, rtol=1e-4))
    assert bool(jnp.allclose(loss0, loss_b[0], atol=1e-3, rtol=1e-3))
    assert bool(jnp.allclose(spec0, spec_b[0], atol=1e-3, rtol=1e-3))
    assert bool(jnp.allclose(clus0, clus_b[0], atol=1e-3, rtol=1e-3))

    print("KERNEL_OK")
</pallas_src>

<mosaic_0001>
module attributes {stable_mosaic.version = 11 : i64} {
  func.func @_dmon_kernel(%arg0: i32, %arg1: memref<1x128x128xbf16, #tpu.memory_space<vmem>>, %arg2: memref<1x128x8xf32, #tpu.memory_space<vmem>>, %arg3: memref<1x128x1xf32, #tpu.memory_space<vmem>>, %arg4: memref<1x128x1xf32, #tpu.memory_space<vmem>>, %arg5: memref<8x32xf32, #tpu.memory_space<vmem>>, %arg6: memref<1x32xf32, #tpu.memory_space<vmem>>, %arg7: memref<32x32xf32, #tpu.memory_space<vmem>>, %arg8: memref<1x32xf32, #tpu.memory_space<vmem>>, %arg9: memref<32x4xf32, #tpu.memory_space<vmem>>, %arg10: memref<1x4xf32, #tpu.memory_space<vmem>>, %arg11: memref<1x4x128xf32, #tpu.memory_space<vmem>>, %arg12: memref<1x8x8xf32, #tpu.memory_space<vmem>>) attributes {dimension_semantics = [#tpu.dimension_semantics<parallel>], iteration_bounds = array<i64: 2>, scalar_prefetch = 0 : i64, scratch_operands = 0 : i64, tpu.core_type = #tpu.core_type<tc>, window_params = [{transform_indices = @transform_0, window_bounds = array<i64: 1, 128, 128>}, {transform_indices = @transform_1, window_bounds = array<i64: 1, 128, 8>}, {transform_indices = @transform_2, window_bounds = array<i64: 1, 128, 1>}, {transform_indices = @transform_3, window_bounds = array<i64: 1, 128, 1>}, {pipeline_mode = #tpu.pipeline_mode<synchronous>, transform_indices = @transform_4, window_bounds = array<i64: 8, 32>}, {pipeline_mode = #tpu.pipeline_mode<synchronous>, transform_indices = @transform_5, window_bounds = array<i64: 1, 32>}, {pipeline_mode = #tpu.pipeline_mode<synchronous>, transform_indices = @transform_6, window_bounds = array<i64: 32, 32>}, {pipeline_mode = #tpu.pipeline_mode<synchronous>, transform_indices = @transform_7, window_bounds = array<i64: 1, 32>}, {pipeline_mode = #tpu.pipeline_mode<synchronous>, transform_indices = @transform_8, window_bounds = array<i64: 32, 4>}, {pipeline_mode = #tpu.pipeline_mode<synchronous>, transform_indices = @transform_9, window_bounds = array<i64: 1, 4>}, {transform_indices = @transform_10, window_bounds = array<i64: 1, 4, 128>}, {transform_indices = @transform_11, window_bounds = array<i64: 1, 8, 8>}]} {
    %c0 = arith.constant 0 : index
    %c0_0 = arith.constant 0 : index
    %c0_1 = arith.constant 0 : index
    %0 = vector.load %arg1[%c0, %c0_0, %c0_1] : memref<1x128x128xbf16, #tpu.memory_space<vmem>>, vector<1x128x128xbf16>
    %1 = vector.shape_cast %0 : vector<1x128x128xbf16> to vector<128x128xbf16>
    %c0_2 = arith.constant 0 : index
    %c0_3 = arith.constant 0 : index
    %c0_4 = arith.constant 0 : index
    %2 = vector.load %arg2[%c0_2, %c0_3, %c0_4] : memref<1x128x8xf32, #tpu.memory_space<vmem>>, vector<1x128x8xf32>
    %3 = vector.shape_cast %2 : vector<1x128x8xf32> to vector<128x8xf32>
    %c0_5 = arith.constant 0 : index
    %c0_6 = arith.constant 0 : index
    %c0_7 = arith.constant 0 : index
    %4 = vector.load %arg3[%c0_5, %c0_6, %c0_7] : memref<1x128x1xf32, #tpu.memory_space<vmem>>, vector<1x128x1xf32>
    %5 = vector.shape_cast %4 : vector<1x128x1xf32> to vector<128x1xf32>
    %c0_8 = arith.constant 0 : index
    %c0_9 = arith.constant 0 : index
    %c0_10 = arith.constant 0 : index
    %6 = vector.load %arg4[%c0_8, %c0_9, %c0_10] : memref<1x128x1xf32, #tpu.memory_space<vmem>>, vector<1x128x1xf32>
    %7 = vector.shape_cast %6 : vector<1x128x1xf32> to vector<128x1xf32>
    %c0_11 = arith.constant 0 : index
    %c0_12 = arith.constant 0 : index
    %8 = vector.load %arg5[%c0_11, %c0_12] : memref<8x32xf32, #tpu.memory_space<vmem>>, vector<8x32xf32>
    %cst = arith.constant dense<0.000000e+00> : vector<128x32xf32>
    %9 = tpu.matmul %3, %8, %cst {dimension_numbers = #tpu.dot_dimension_numbers<[1], [0], [0], [1], [0, 0, 1, 1], [], []>} : vector<128x8xf32>, vector<8x32xf32>, vector<128x32xf32> -> vector<128x32xf32>
    %10 = vector.broadcast %5 : vector<128x1xf32> to vector<128x32xf32>
    %11 = arith.mulf %10, %9 : vector<128x32xf32>
    %12 = arith.truncf %11 : vector<128x32xf32> to vector<128x32xbf16>
    %cst_13 = arith.constant dense<0.000000e+00> : vector<128x32xf32>
    %13 = tpu.matmul %1, %12, %cst_13 {dimension_numbers = #tpu.dot_dimension_numbers<[1], [0], [0], [1], [0, 0, 1, 1], [], []>} : vector<128x128xbf16>, vector<128x32xbf16>, vector<128x32xf32> -> vector<128x32xf32>
    %14 = arith.addf %13, %11 : vector<128x32xf32>
    %15 = vector.broadcast %5 : vector<128x1xf32> to vector<128x32xf32>
    %16 = arith.mulf %15, %14 : vector<128x32xf32>
    %c0_14 = arith.constant 0 : index
    %c0_15 = arith.constant 0 : index
    %17 = vector.load %arg6[%c0_14, %c0_15] : memref<1x32xf32, #tpu.memory_space<vmem>>, vector<1x32xf32>
    %18 = vector.broadcast %17 : vector<1x32xf32> to vector<128x32xf32>
    %19 = arith.addf %16, %18 : vector<128x32xf32>
    %cst_16 = arith.constant 0.000000e+00 : f32
    %20 = vector.broadcast %cst_16 : f32 to vector<128x32xf32>
    %21 = arith.maximumf %19, %20 : vector<128x32xf32>
    %c0_17 = arith.constant 0 : index
    %c0_18 = arith.constant 0 : index
    %22 = vector.load %arg7[%c0_17, %c0_18] : memref<32x32xf32, #tpu.memory_space<vmem>>, vector<32x32xf32>
    %cst_19 = arith.constant dense<0.000000e+00> : vector<128x32xf32>
    %23 = tpu.matmul %21, %22, %cst_19 {dimension_numbers = #tpu.dot_dimension_numbers<[1], [0], [0], [1], [0, 0, 1, 1], [], []>} : vector<128x32xf32>, vector<32x32xf32>, vector<128x32xf32> -> vector<128x32xf32>
    %24 = vector.broadcast %5 : vector<128x1xf32> to vector<128x32xf32>
    %25 = arith.mulf %24, %23 : vector<128x32xf32>
    %26 = arith.truncf %25 : vector<128x32xf32> to vector<128x32xbf16>
    %cst_20 = arith.constant dense<0.000000e+00> : vector<128x32xf32>
    %27 = tpu.matmul %1, %26, %cst_20 {dimension_numbers = #tpu.dot_dimension_numbers<[1], [0], [0], [1], [0, 0, 1, 1], [], []>} : vector<128x128xbf16>, vector<128x32xbf16>, vector<128x32xf32> -> vector<128x32xf32>
    %28 = arith.addf %27, %25 : vector<128x32xf32>
    %29 = vector.broadcast %5 : vector<128x1xf32> to vector<128x32xf32>
    %30 = arith.mulf %29, %28 : vector<128x32xf32>
    %c0_21 = arith.constant 0 : index
    %c0_22 = arith.constant 0 : index
    %31 = vector.load %arg8[%c0_21, %c0_22] : memref<1x32xf32, #tpu.memory_space<vmem>>, vector<1x32xf32>
    %32 = vector.broadcast %31 : vector<1x32xf32> to vector<128x32xf32>
    %33 = arith.addf %30, %32 : vector<128x32xf32>
    %cst_23 = arith.constant 0.000000e+00 : f32
    %34 = vector.broadcast %cst_23 : f32 to vector<128x32xf32>
    %35 = arith.maximumf %33, %34 : vector<128x32xf32>
    %c0_24 = arith.constant 0 : index
    %c0_25 = arith.constant 0 : index
    %36 = vector.load %arg9[%c0_24, %c0_25] : memref<32x4xf32, #tpu.memory_space<vmem>>, vector<32x4xf32>
    %cst_26 = arith.constant dense<0.000000e+00> : vector<128x4xf32>
    %37 = tpu.matmul %35, %36, %cst_26 {dimension_numbers = #tpu.dot_dimension_numbers<[1], [0], [0], [1], [0, 0, 1, 1], [], []>} : vector<128x32xf32>, vector<32x4xf32>, vector<128x4xf32> -> vector<128x4xf32>
    %c0_27 = arith.constant 0 : index
    %c0_28 = arith.constant 0 : index
    %38 = vector.load %arg10[%c0_27, %c0_28] : memref<1x4xf32, #tpu.memory_space<vmem>>, vector<1x4xf32>
    %39 = vector.broadcast %38 : vector<1x4xf32> to vector<128x4xf32>
    %40 = arith.addf %37, %39 : vector<128x4xf32>
    %cst_29 = arith.constant dense<0xFF800000> : vector<128xf32>
    %41 = vector.multi_reduction <maximumf>, %40, %cst_29 [1] : vector<128x4xf32> to vector<128xf32>
    %42 = vector.shape_cast %41 : vector<128xf32> to vector<128x1xf32>
    %43 = vector.broadcast %42 : vector<128x1xf32> to vector<128x4xf32>
    %44 = arith.subf %40, %43 : vector<128x4xf32>
    %45 = math.exp %44 : vector<128x4xf32>
    %cst_30 = arith.constant dense<0.000000e+00> : vector<128xf32>
    %46 = vector.multi_reduction <add>, %45, %cst_30 [1] : vector<128x4xf32> to vector<128xf32>
    %47 = vector.shape_cast %46 : vector<128xf32> to vector<128x1xf32>
    %48 = tpu.reciprocal %47 {approx = true} : vector<128x1xf32> -> vector<128x1xf32>
    %49 = vector.broadcast %48 : vector<128x1xf32> to vector<128x4xf32>
    %50 = arith.mulf %45, %49 : vector<128x4xf32>
    %51 = tpu.transpose %50, [1, 0] : vector<128x4xf32> -> vector<4x128xf32>
    %c0_31 = arith.constant 0 : index
    %c0_32 = arith.constant 0 : index
    %c0_33 = arith.constant 0 : index
    %52 = vector.load %arg11[%c0_31, %c0_32, %c0_33] : memref<1x4x128xf32, #tpu.memory_space<vmem>>, vector<1x4x128xf32>
    %53 = vector.shape_cast %52 : vector<1x4x128xf32> to vector<4x128xf32>
    %54 = vector.shape_cast %51 : vector<4x128xf32> to vector<1x4x128xf32>
    tpu.vector_store %arg11[%c0_31, %c0_32, %c0_33], %54 {strides = array<i32>} : memref<1x4x128xf32, #tpu.memory_space<vmem>>, vector<1x4x128xf32>,
    %55 = tpu.iota {dimensions = array<i32: 0>} : vector<8x128xi32>
    %56 = tpu.iota {dimensions = array<i32: 1>} : vector<8x128xi32>
    %c16_i32 = arith.constant 16 : i32
    %57 = vector.broadcast %c16_i32 : i32 to vector<8x128xi32>
    %58 = arith.muli %55, %57 : vector<8x128xi32>
    %59 = arith.cmpi sge, %56, %58 : vector<8x128xi32>
    %c16_i32_34 = arith.constant 16 : i32
    %60 = vector.broadcast %c16_i32_34 : i32 to vector<8x128xi32>
    %61 = arith.addi %58, %60 : vector<8x128xi32>
    %62 = arith.cmpi slt, %56, %61 : vector<8x128xi32>
    %63 = arith.andi %59, %62 : vector<8x128xi1>
    %64 = arith.extui %63 : vector<8x128xi1> to vector<8x128xi32>
    %65 = arith.sitofp %64 : vector<8x128xi32> to vector<8x128xf32>
    %66 = arith.truncf %50 : vector<128x4xf32> to vector<128x4xbf16>
    %cst_35 = arith.constant dense<0.000000e+00> : vector<128x4xf32>
    %67 = tpu.matmul %1, %66, %cst_35 {dimension_numbers = #tpu.dot_dimension_numbers<[1], [0], [0], [1], [0, 0, 1, 1], [], []>} : vector<128x128xbf16>, vector<128x4xbf16>, vector<128x4xf32> -> vector<128x4xf32>
    %68 = arith.mulf %67, %50 : vector<128x4xf32>
    %cst_36 = arith.constant dense<0.000000e+00> : vector<8x4xf32>
    %69 = tpu.matmul %65, %68, %cst_36 {dimension_numbers = #tpu.dot_dimension_numbers<[1], [0], [0], [1], [0, 0, 1, 1], [], []>} : vector<8x128xf32>, vector<128x4xf32>, vector<8x4xf32> -> vector<8x4xf32>
    %70 = vector.broadcast %7 : vector<128x1xf32> to vector<128x4xf32>
    %71 = arith.mulf %50, %70 : vector<128x4xf32>
    %cst_37 = arith.constant dense<0.000000e+00> : vector<8x4xf32>
    %72 = tpu.matmul %65, %71, %cst_37 {dimension_numbers = #tpu.dot_dimension_numbers<[1], [0], [0], [1], [0, 0, 1, 1], [], []>} : vector<8x128xf32>, vector<128x4xf32>, vector<8x4xf32> -> vector<8x4xf32>
    %cst_38 = arith.constant dense<0.000000e+00> : vector<8x4xf32>
    %73 = tpu.matmul %65, %50, %cst_38 {dimension_numbers = #tpu.dot_dimension_numbers<[1], [0], [0], [1], [0, 0, 1, 1], [], []>} : vector<8x128xf32>, vector<128x4xf32>, vector<8x4xf32> -> vector<8x4xf32>
    %cst_39 = arith.constant dense<0.000000e+00> : vector<8xf32>
    %74 = vector.multi_reduction <add>, %69, %cst_39 [1] : vector<8x4xf32> to vector<8xf32>
    %75 = vector.shape_cast %74 : vector<8xf32> to vector<8x1xf32>
    %cst_40 = arith.constant dense<0.000000e+00> : vector<8xf32>
    %76 = vector.multi_reduction <add>, %72, %cst_40 [1] : vector<8x4xf32> to vector<8xf32>
    %77 = vector.shape_cast %76 : vector<8xf32> to vector<8x1xf32>
    %cst_41 = arith.constant 0.000000e+00 : f32
    %78 = vector.broadcast %cst_41 : f32 to vector<8x1xf32>
    %79 = arith.cmpf ogt, %77, %78 : vector<8x1xf32>
    %cst_42 = arith.constant 1.000000e+00 : f32
    %80 = vector.broadcast %cst_42 : f32 to vector<8x1xf32>
    %81 = arith.divf %80, %77 : vector<8x1xf32>
    %cst_43 = arith.constant 0.000000e+00 : f32
    %82 = vector.broadcast %cst_43 : f32 to vector<8x1xf32>
    %83 = arith.select %79, %81, %82 : vector<8x1xi1>, vector<8x1xf32>
    %84 = arith.mulf %72, %72 : vector<8x4xf32>
    %cst_44 = arith.constant dense<0.000000e+00> : vector<8xf32>
    %85 = vector.multi_reduction <add>, %84, %cst_44 [1] : vector<8x4xf32> to vector<8xf32>
    %86 = vector.shape_cast %85 : vector<8xf32> to vector<8x1xf32>
    %87 = arith.mulf %86, %83 : vector<8x1xf32>
    %88 = arith.subf %87, %75 : vector<8x1xf32>
    %89 = arith.mulf %88, %83 : vector<8x1xf32>
    %90 = arith.mulf %73, %73 : vector<8x4xf32>
    %cst_45 = arith.constant dense<0.000000e+00> : vector<8xf32>
    %91 = vector.multi_reduction <add>, %90, %cst_45 [1] : vector<8x4xf32> to vector<8xf32>
    %92 = vector.shape_cast %91 : vector<8xf32> to vector<8x1xf32>
    %93 = math.sqrt %92 : vector<8x1xf32>
    %cst_46 = arith.constant 1.250000e-01 : f32
    %94 = vector.broadcast %cst_46 : f32 to vector<8x1xf32>
    %95 = arith.mulf %93, %94 : vector<8x1xf32>
    %cst_47 = arith.constant 1.000000e+00 : f32
    %96 = vector.broadcast %cst_47 : f32 to vector<8x1xf32>
    %97 = arith.subf %95, %96 : vector<8x1xf32>
    %cst_48 = arith.constant 1.000000e+02 : f32
    %98 = vector.broadcast %cst_48 : f32 to vector<8x1xf32>
    %99 = arith.mulf %98, %89 : vector<8x1xf32>
    %cst_49 = arith.constant 1.000000e+02 : f32
    %100 = vector.broadcast %cst_49 : f32 to vector<8x1xf32>
    %101 = arith.mulf %100, %97 : vector<8x1xf32>
    %102 = arith.addf %99, %101 : vector<8x1xf32>
    %103 = tpu.iota {dimensions = array<i32: 1>} : vector<8x8xi32>
    %c0_i32 = arith.constant 0 : i32
    %104 = vector.broadcast %c0_i32 : i32 to vector<8x8xi32>
    %105 = arith.cmpi eq, %103, %104 : vector<8x8xi32>
    %cst_50 = arith.constant 0.000000e+00 : f32
    %106 = vector.shape_cast %102 : vector<8x1xf32> to vector<8x1xf32>
    %107 = vector.broadcast %106 : vector<8x1xf32> to vector<8x8xf32>
    %108 = vector.broadcast %cst_50 : f32 to vector<8x8xf32>
    %109 = arith.select %105, %107, %108 : vector<8x8xi1>, vector<8x8xf32>
    %c1_i32 = arith.constant 1 : i32
    %110 = vector.broadcast %c1_i32 : i32 to vector<8x8xi32>
    %111 = arith.cmpi eq, %103, %110 : vector<8x8xi32>
    %cst_51 = arith.constant 0.000000e+00 : f32
    %112 = vector.shape_cast %99 : vector<8x1xf32> to vector<8x1xf32>
    %113 = vector.broadcast %112 : vector<8x1xf32> to vector<8x8xf32>
    %114 = vector.broadcast %cst_51 : f32 to vector<8x8xf32>
    %115 = arith.select %111, %113, %114 : vector<8x8xi1>, vector<8x8xf32>
    %116 = arith.addf %109, %115 : vector<8x8xf32>
    %c2_i32 = arith.constant 2 : i32
    %117 = vector.broadcast %c2_i32 : i32 to vector<8x8xi32>
    %118 = arith.cmpi eq, %103, %117 : vector<8x8xi32>
    %cst_52 = arith.constant 0.000000e+00 : f32
    %119 = vector.shape_cast %101 : vector<8x1xf32> to vector<8x1xf32>
    %120 = vector.broadcast %119 : vector<8x1xf32> to vector<8x8xf32>
    %121 = vector.broadcast %cst_52 : f32 to vector<8x8xf32>
    %122 = arith.select %118, %120, %121 : vector<8x8xi1>, vector<8x8xf32>
    %123 = arith.addf %116, %122 : vector<8x8xf32>
    %c0_53 = arith.constant 0 : index
    %c0_54 = arith.constant 0 : index
    %c0_55 = arith.constant 0 : index
    %124 = vector.load %arg12[%c0_53, %c0_54, %c0_55] : memref<1x8x8xf32, #tpu.memory_space<vmem>>, vector<1x8x8xf32>
    %125 = vector.shape_cast %124 : vector<1x8x8xf32> to vector<8x8xf32>
    %126 = vector.shape_cast %123 : vector<8x8xf32> to vector<1x8x8xf32>
    tpu.vector_store %arg12[%c0_53, %c0_54, %c0_55], %126 {strides = array<i32>} : memref<1x8x8xf32, #tpu.memory_space<vmem>>, vector<1x8x8xf32>,
    return
  }
  func.func @transform_0(%arg0: i32) -> (i32, i32, i32) {
    %c0_i32 = arith.constant 0 : i32
    %c0_i32_0 = arith.constant 0 : i32
    %c0_i32_1 = arith.constant 0 : i32
    return %arg0, %c0_i32, %c0_i32_0 : i32, i32, i32
  }
  func.func @transform_1(%arg0: i32) -> (i32, i32, i32) {
    %c0_i32 = arith.constant 0 : i32
    %c0_i32_0 = arith.constant 0 : i32
    %c0_i32_1 = arith.constant 0 : i32
    return %arg0, %c0_i32, %c0_i32_0 : i32, i32, i32
  }
  func.func @transform_2(%arg0: i32) -> (i32, i32, i32) {
    %c0_i32 = arith.constant 0 : i32
    %c0_i32_0 = arith.constant 0 : i32
    %c0_i32_1 = arith.constant 0 : i32
    return %arg0, %c0_i32, %c0_i32_0 : i32, i32, i32
  }
  func.func @transform_3(%arg0: i32) -> (i32, i32, i32) {
    %c0_i32 = arith.constant 0 : i32
    %c0_i32_0 = arith.constant 0 : i32
    %c0_i32_1 = arith.constant 0 : i32
    return %arg0, %c0_i32, %c0_i32_0 : i32, i32, i32
  }
  func.func @transform_4(%arg0: i32) -> (i32, i32) {
    %c0_i32 = arith.constant 0 : i32
    %c0_i32_0 = arith.constant 0 : i32
    %c0_i32_1 = arith.constant 0 : i32
    return %c0_i32, %c0_i32_0 : i32, i32
  }
  func.func @transform_5(%arg0: i32) -> (i32, i32) {
    %c0_i32 = arith.constant 0 : i32
    %c0_i32_0 = arith.constant 0 : i32
    %c0_i32_1 = arith.constant 0 : i32
    return %c0_i32, %c0_i32_0 : i32, i32
  }
  func.func @transform_6(%arg0: i32) -> (i32, i32) {
    %c0_i32 = arith.constant 0 : i32
    %c0_i32_0 = arith.constant 0 : i32
    %c0_i32_1 = arith.constant 0 : i32
    return %c0_i32, %c0_i32_0 : i32, i32
  }
  func.func @transform_7(%arg0: i32) -> (i32, i32) {
    %c0_i32 = arith.constant 0 : i32
    %c0_i32_0 = arith.constant 0 : i32
    %c0_i32_1 = arith.constant 0 : i32
    return %c0_i32, %c0_i32_0 : i32, i32
  }
  func.func @transform_8(%arg0: i32) -> (i32, i32) {
    %c0_i32 = arith.constant 0 : i32
    %c0_i32_0 = arith.constant 0 : i32
    %c0_i32_1 = arith.constant 0 : i32
    return %c0_i32, %c0_i32_0 : i32, i32
  }
  func.func @transform_9(%arg0: i32) -> (i32, i32) {
    %c0_i32 = arith.constant 0 : i32
    %c0_i32_0 = arith.constant 0 : i32
    %c0_i32_1 = arith.constant 0 : i32
    return %c0_i32, %c0_i32_0 : i32, i32
  }
  func.func @transform_10(%arg0: i32) -> (i32, i32, i32) {
    %c0_i32 = arith.constant 0 : i32
    %c0_i32_0 = arith.constant 0 : i32
    %c0_i32_1 = arith.constant 0 : i32
    return %arg0, %c0_i32, %c0_i32_0 : i32, i32, i32
  }
  func.func @transform_11(%arg0: i32) -> (i32, i32, i32) {
    %c0_i32 = arith.constant 0 : i32
    %c0_i32_0 = arith.constant 0 : i32
    %c0_i32_1 = arith.constant 0 : i32
    return %arg0, %c0_i32, %c0_i32_0 : i32, i32, i32
  }
}

</mosaic_0001>

<llo_original>
// kernel: tpu_custom_call.1
$region0: #{tpu_custom_call.1}
  #allocation0 [shape = 'u32[]', space=smem, size = 0x4, offset = 0x4, fixed_abs, tag = 'smem constant byte address 0x4 - core index']
  #allocation1 [shape = 'u32[72,128]{1,0:T(1,128)}', space=vmem, size = 0x9000, scoped, tag = 'internal scratch']
  %s0 = inlined_call_operand.vmem [shape: bf16[2,128,128], index: 0, kind: input, shape index: {}]
  %s1 = inlined_call_operand.vmem [shape: f32[2,128,8], index: 1, kind: input, shape index: {}]
  %s2 = inlined_call_operand.vmem [shape: f32[2,128,1], index: 2, kind: input, shape index: {}]
  %s3 = inlined_call_operand.vmem [shape: f32[2,128,1], index: 3, kind: input, shape index: {}]
  %s4 = inlined_call_operand.vmem [shape: f32[8,32], index: 4, kind: input, shape index: {}]
  %s5 = inlined_call_operand.vmem [shape: f32[1,32], index: 5, kind: input, shape index: {}]
  %s6 = inlined_call_operand.vmem [shape: f32[32,32], index: 6, kind: input, shape index: {}]
  %s7 = inlined_call_operand.vmem [shape: f32[1,32], index: 7, kind: input, shape index: {}]
  %s8 = inlined_call_operand.vmem [shape: f32[32,4], index: 8, kind: input, shape index: {}]
  %s9 = inlined_call_operand.vmem [shape: f32[1,4], index: 9, kind: input, shape index: {}]
  %s10 = inlined_call_operand.hbm [shape: f32[2,4,128], index: 10, kind: output, shape index: {0}]
  %s11 = inlined_call_operand.hbm [shape: f32[2,8,8], index: 11, kind: output, shape index: {1}]
  %12 = xla_tuple %s10, %s11
  %s13 = sld [smem:[#allocation0]]
  $region81: #{tpu_custom_call.1} parent=0
    _
  %s15 = ssub.s32 1, %s13
  %s16 = scalar_select 0, %s15, %s13
  $region1: #{tpu_custom_call.1} parent=0
    #allocation2 [shape = 'u8[4096]{0}', space=vmem, size = 0x1000, scoped, tag = 'output window, operand 0']
    #allocation3 [shape = 's32[2]{0}', space=sflag, size = 0x8, scoped, tag = 'scoped memory for tpu_custom_call.1']
    #allocation4 [shape = 'u8[8192]{0}', space=vmem, size = 0x2000, scoped, tag = 'output window, operand 1']
    #allocation5 [shape = 's32[2]{0}', space=sflag, size = 0x8, scoped, tag = 'scoped memory for tpu_custom_call.1']
    %17 = vsyncpa [#allocation3], 0
    %s18 = scalar_lea.sflag [#allocation3], 1
    %19 = vsyncpa %s18, 0
    %20 = vsyncpa [#allocation5], 0
    %s21 = scalar_lea.sflag [#allocation5], 1
    %22 = vsyncpa %s21, 0
    loop: start=0, step=1, limit=4
    $region2: #{tpu_custom_call.1} parent=1 // loop_pre_header
      _
    $region3: #{tpu_custom_call.1} parent=1 // loop_header
      %s24 = sphi 0, %s28
      %p25 = scmp.ge.s32.totalorder %s24, 4
      %s34 = sphi 0, %s36
      %s37 = sphi 0, %s34
      %s38 = sphi 0, %s37
      %s54 = sphi 0, %s38
      %s60 = sphi 0, %s62
      %s63 = sphi 0, %s60
      %s64 = sphi 0, %s63
      %s80 = sphi 0, %s64
      %s86 = sphi 0, %s88
      %s89 = sphi 0, %s86
      %s90 = sphi 0, %s89
      %s106 = sphi 0, %s90
      %s112 = sphi 0, %s114
      %s115 = sphi 0, %s112
      %s116 = sphi 0, %s115
      %s132 = sphi 0, %s116
      %s136 = sphi 0, %s136
      %s138 = sphi 0, %s136
      %s139 = sphi 0, %s138
      %s153 = sphi 0, %s139
      %s157 = sphi 0, %s157
      %s159 = sphi 0, %s157
      %s160 = sphi 0, %s159
      %s174 = sphi 0, %s160
      %s178 = sphi 0, %s178
      %s180 = sphi 0, %s178
      %s181 = sphi 0, %s180
      %s195 = sphi 0, %s181
      %s199 = sphi 0, %s199
      %s201 = sphi 0, %s199
      %s202 = sphi 0, %s201
      %s216 = sphi 0, %s202
      %s220 = sphi 0, %s220
      %s222 = sphi 0, %s220
      %s223 = sphi 0, %s222
      %s237 = sphi 0, %s223
      %s241 = sphi 0, %s241
      %s243 = sphi 0, %s241
      %s244 = sphi 0, %s243
      %s258 = sphi 0, %s244
      %s264 = sphi 0, %s266
      %s267 = sphi 0, %s264
      %s268 = sphi 0, %s267
      %s284 = sphi 0, %s268
      %s290 = sphi 0, %s292
      %s293 = sphi 0, %s290
      %s294 = sphi 0, %s293
      %s310 = sphi 0, %s294
    $region4: #{tpu_custom_call.1} parent=1 // loop_header_branch
      %27 = sbr.rel (%p25) target = $region8
    $region5: #{tpu_custom_call.1} parent=1 // loop_body
      %s29 = ssub.s32 %s24, 1
      %s30 = ssub.s32 %s24, 2
      %s31 = sadd.s32 %s24, 1
      %s32 = ssub.s32 %s24, %s31
      %p33 = scmp.eq.s32.totalorder %s32, 0
      %s35 = sadd.s32 %s34, 1
      %s36 = scalar_select %p33, %s34, %s35
      %p39 = pneg %p33
      %p40 = scmp.eq.s32.totalorder %s24, 1
      %p41 = por %p39, %p40
      %p42 = scmp.ne.s32.totalorder %s34, %s37
      %p43 = scmp.eq.s32.totalorder %s24, 0
      %p44 = por %p42, %p43
      %p45 = scmp.ne.s32.totalorder %s34, %s37
      %p46 = scmp.eq.s32.totalorder %s29, 1
      %p47 = por %p45, %p46
      %p48 = scmp.ne.s32.totalorder %s37, %s38
      %p49 = scmp.eq.s32.totalorder %s29, 0
      %p50 = por %p48, %p49
      %p51 = scmp.ne.s32.totalorder %s37, %s38
      %p52 = scmp.eq.s32.totalorder %s30, 1
      %p53 = por %p51, %p52
      %p55 = scmp.ne.s32.totalorder %s38, %s54
      %p56 = scmp.eq.s32.totalorder %s30, 0
      %p57 = por %p55, %p56
      %s58 = ssub.s32 %s24, %s31
      %p59 = scmp.eq.s32.totalorder %s58, 0
      %s61 = sadd.s32 %s60, 1
      %s62 = scalar_select %p59, %s60, %s61
      %p65 = pneg %p59
      %p66 = scmp.eq.s32.totalorder %s24, 1
      %p67 = por %p65, %p66
      %p68 = scmp.ne.s32.totalorder %s60, %s63
      %p69 = scmp.eq.s32.totalorder %s24, 0
      %p70 = por %p68, %p69
      %p71 = scmp.ne.s32.totalorder %s60, %s63
      %p72 = scmp.eq.s32.totalorder %s29, 1
      %p73 = por %p71, %p72
      %p74 = scmp.ne.s32.totalorder %s63, %s64
      %p75 = scmp.eq.s32.totalorder %s29, 0
      %p76 = por %p74, %p75
      %p77 = scmp.ne.s32.totalorder %s63, %s64
      %p78 = scmp.eq.s32.totalorder %s30, 1
      %p79 = por %p77, %p78
      %p81 = scmp.ne.s32.totalorder %s64, %s80
      %p82 = scmp.eq.s32.totalorder %s30, 0
      %p83 = por %p81, %p82
      %s84 = ssub.s32 %s24, %s31
      %p85 = scmp.eq.s32.totalorder %s84, 0
      %s87 = sadd.s32 %s86, 1
      %s88 = scalar_select %p85, %s86, %s87
      %p91 = pneg %p85
      %p92 = scmp.eq.s32.totalorder %s24, 1
      %p93 = por %p91, %p92
      %p94 = scmp.ne.s32.totalorder %s86, %s89
      %p95 = scmp.eq.s32.totalorder %s24, 0
      %p96 = por %p94, %p95
      %p97 = scmp.ne.s32.totalorder %s86, %s89
      %p98 = scmp.eq.s32.totalorder %s29, 1
      %p99 = por %p97, %p98
      %p100 = scmp.ne.s32.totalorder %s89, %s90
      %p101 = scmp.eq.s32.totalorder %s29, 0
      %p102 = por %p100, %p101
      %p103 = scmp.ne.s32.totalorder %s89, %s90
      %p104 = scmp.eq.s32.totalorder %s30, 1
      %p105 = por %p103, %p104
      %p107 = scmp.ne.s32.totalorder %s90, %s106
      %p108 = scmp.eq.s32.totalorder %s30, 0
      %p109 = por %p107, %p108
      %s110 = ssub.s32 %s24, %s31
      %p111 = scmp.eq.s32.totalorder %s110, 0
      %s113 = sadd.s32 %s112, 1
      %s114 = scalar_select %p111, %s112, %s113
      %p117 = pneg %p111
      %p118 = scmp.eq.s32.totalorder %s24, 1
      %p119 = por %p117, %p118
      %p120 = scmp.ne.s32.totalorder %s112, %s115
      %p121 = scmp.eq.s32.totalorder %s24, 0
      %p122 = por %p120, %p121
      %p123 = scmp.ne.s32.totalorder %s112, %s115
      %p124 = scmp.eq.s32.totalorder %s29, 1
      %p125 = por %p123, %p124
      %p126 = scmp.ne.s32.totalorder %s115, %s116
      %p127 = scmp.eq.s32.totalorder %s29, 0
      %p128 = por %p126, %p127
      %p129 = scmp.ne.s32.totalorder %s115, %s116
      %p130 = scmp.eq.s32.totalorder %s30, 1
      %p131 = por %p129, %p130
      %p133 = scmp.ne.s32.totalorder %s116, %s132
      %p134 = scmp.eq.s32.totalorder %s30, 0
      %p135 = por %p133, %p134
      %s137 = sadd.s32 %s136, 1
      %p140 = scmp.eq.s32.totalorder %s24, 1
      %p141 = scmp.ne.s32.totalorder %s136, %s138
      %p142 = scmp.eq.s32.totalorder %s24, 0
      %p143 = por %p141, %p142
      %p144 = scmp.ne.s32.totalorder %s136, %s138
      %p145 = scmp.eq.s32.totalorder %s29, 1
      %p146 = por %p144, %p145
      %p147 = scmp.ne.s32.totalorder %s138, %s139
      %p148 = scmp.eq.s32.totalorder %s29, 0
      %p149 = por %p147, %p148
      %p150 = scmp.ne.s32.totalorder %s138, %s139
      %p151 = scmp.eq.s32.totalorder %s30, 1
      %p152 = por %p150, %p151
      %p154 = scmp.ne.s32.totalorder %s139, %s153
      %p155 = scmp.eq.s32.totalorder %s30, 0
      %p156 = por %p154, %p155
      %s158 = sadd.s32 %s157, 1
      %p161 = scmp.eq.s32.totalorder %s24, 1
      %p162 = scmp.ne.s32.totalorder %s157, %s159
      %p163 = scmp.eq.s32.totalorder %s24, 0
      %p164 = por %p162, %p163
      %p165 = scmp.ne.s32.totalorder %s157, %s159
      %p166 = scmp.eq.s32.totalorder %s29, 1
      %p167 = por %p165, %p166
      %p168 = scmp.ne.s32.totalorder %s159, %s160
      %p169 = scmp.eq.s32.totalorder %s29, 0
      %p170 = por %p168, %p169
      %p171 = scmp.ne.s32.totalorder %s159, %s160
      %p172 = scmp.eq.s32.totalorder %s30, 1
      %p173 = por %p171, %p172
      %p175 = scmp.ne.s32.totalorder %s160, %s174
      %p176 = scmp.eq.s32.totalorder %s30, 0
      %p177 = por %p175, %p176
      %s179 = sadd.s32 %s178, 1
      %p182 = scmp.eq.s32.totalorder %s24, 1
      %p183 = scmp.ne.s32.totalorder %s178, %s180
      %p184 = scmp.eq.s32.totalorder %s24, 0
      %p185 = por %p183, %p184
      %p186 = scmp.ne.s32.totalorder %s178, %s180
      %p187 = scmp.eq.s32.totalorder %s29, 1
      %p188 = por %p186, %p187
      %p189 = scmp.ne.s32.totalorder %s180, %s181
      %p190 = scmp.eq.s32.totalorder %s29, 0
      %p191 = por %p189, %p190
      %p192 = scmp.ne.s32.totalorder %s180, %s181
      %p193 = scmp.eq.s32.totalorder %s30, 1
      %p194 = por %p192, %p193
      %p196 = scmp.ne.s32.totalorder %s181, %s195
      %p197 = scmp.eq.s32.totalorder %s30, 0
      %p198 = por %p196, %p197
      %s200 = sadd.s32 %s199, 1
      %p203 = scmp.eq.s32.totalorder %s24, 1
      %p204 = scmp.ne.s32.totalorder %s199, %s201
      %p205 = scmp.eq.s32.totalorder %s24, 0
      %p206 = por %p204, %p205
      %p207 = scmp.ne.s32.totalorder %s199, %s201
      %p208 = scmp.eq.s32.totalorder %s29, 1
      %p209 = por %p207, %p208
      %p210 = scmp.ne.s32.totalorder %s201, %s202
      %p211 = scmp.eq.s32.totalorder %s29, 0
      %p212 = por %p210, %p211
      %p213 = scmp.ne.s32.totalorder %s201, %s202
      %p214 = scmp.eq.s32.totalorder %s30, 1
      %p215 = por %p213, %p214
      %p217 = scmp.ne.s32.totalorder %s202, %s216
      %p218 = scmp.eq.s32.totalorder %s30, 0
      %p219 = por %p217, %p218
      %s221 = sadd.s32 %s220, 1
      %p224 = scmp.eq.s32.totalorder %s24, 1
      %p225 = scmp.ne.s32.totalorder %s220, %s222
      %p226 = scmp.eq.s32.totalorder %s24, 0
      %p227 = por %p225, %p226
      %p228 = scmp.ne.s32.totalorder %s220, %s222
      %p229 = scmp.eq.s32.totalorder %s29, 1
      %p230 = por %p228, %p229
      %p231 = scmp.ne.s32.totalorder %s222, %s223
      %p232 = scmp.eq.s32.totalorder %s29, 0
      %p233 = por %p231, %p232
      %p234 = scmp.ne.s32.totalorder %s222, %s223
      %p235 = scmp.eq.s32.totalorder %s30, 1
      %p236 = por %p234, %p235
      %p238 = scmp.ne.s32.totalorder %s223, %s237
      %p239 = scmp.eq.s32.totalorder %s30, 0
      %p240 = por %p238, %p239
      %s242 = sadd.s32 %s241, 1
      %p245 = scmp.eq.s32.totalorder %s24, 1
      %p246 = scmp.ne.s32.totalorder %s241, %s243
      %p247 = scmp.eq.s32.totalorder %s24, 0
      %p248 = por %p246, %p247
      %p249 = scmp.ne.s32.totalorder %s241, %s243
      %p250 = scmp.eq.s32.totalorder %s29, 1
      %p251 = por %p249, %p250
      %p252 = scmp.ne.s32.totalorder %s243, %s244
      %p253 = scmp.eq.s32.totalorder %s29, 0
      %p254 = por %p252, %p253
      %p255 = scmp.ne.s32.totalorder %s243, %s244
      %p256 = scmp.eq.s32.totalorder %s30, 1
      %p257 = por %p255, %p256
      %p259 = scmp.ne.s32.totalorder %s244, %s258
      %p260 = scmp.eq.s32.totalorder %s30, 0
      %p261 = por %p259, %p260
      %s262 = ssub.s32 %s24, %s31
      %p263 = scmp.eq.s32.totalorder %s262, 0
      %s265 = sadd.s32 %s264, 1
      %s266 = scalar_select %p263, %s264, %s265
      %p269 = pneg %p263
      %p270 = scmp.eq.s32.totalorder %s24, 1
      %p271 = por %p269, %p270
      %p272 = scmp.ne.s32.totalorder %s264, %s267
      %p273 = scmp.eq.s32.totalorder %s24, 0
      %p274 = por %p272, %p273
      %p275 = scmp.ne.s32.totalorder %s264, %s267
      %p276 = scmp.eq.s32.totalorder %s29, 1
      %p277 = por %p275, %p276
      %p278 = scmp.ne.s32.totalorder %s267, %s268
      %p279 = scmp.eq.s32.totalorder %s29, 0
      %p280 = por %p278, %p279
      %p281 = scmp.ne.s32.totalorder %s267, %s268
      %p282 = scmp.eq.s32.totalorder %s30, 1
      %p283 = por %p281, %p282
      %p285 = scmp.ne.s32.totalorder %s268, %s284
      %p286 = scmp.eq.s32.totalorder %s30, 0
      %p287 = por %p285, %p286
      %s288 = ssub.s32 %s24, %s31
      %p289 = scmp.eq.s32.totalorder %s288, 0
      %s291 = sadd.s32 %s290, 1
      %s292 = scalar_select %p289, %s290, %s291
      %p295 = pneg %p289
      %p296 = scmp.eq.s32.totalorder %s24, 1
      %p297 = por %p295, %p296
      %p298 = scmp.ne.s32.totalorder %s290, %s293
      %p299 = scmp.eq.s32.totalorder %s24, 0
      %p300 = por %p298, %p299
      %p301 = scmp.ne.s32.totalorder %s290, %s293
      %p302 = scmp.eq.s32.totalorder %s29, 1
      %p303 = por %p301, %p302
      %p304 = scmp.ne.s32.totalorder %s293, %s294
      %p305 = scmp.eq.s32.totalorder %s29, 0
      %p306 = por %p304, %p305
      %p307 = scmp.ne.s32.totalorder %s293, %s294
      %p308 = scmp.eq.s32.totalorder %s30, 1
      %p309 = por %p307, %p308
      %p311 = scmp.ne.s32.totalorder %s294, %s310
      %p312 = scmp.eq.s32.totalorder %s30, 0
      %p313 = por %p311, %p312
      %p314 = scmp.le.s32.totalorder 1, %s24
      %p315 = scmp.lt.s32.totalorder %s24, 3
      %p316 = pnand %p314, %p315
      %p317 = pneg %p316
      // Predicated region
      $region9: #{tpu_custom_call.1} parent=5 // pred_check
        _
      $region10: #{tpu_custom_call.1} parent=5 // pred_check_branch
        %319 = sbr.rel (%p316) target = $region12
      $region11: #{tpu_custom_call.1} parent=5 // pred_region
        %s320 = ssub.s32 %s24, 1
        // Predicated region
        $region13: #{tpu_custom_call.1} parent=11 // pred_check
          %p321 = pneg %p149
        $region14: #{tpu_custom_call.1} parent=11 // pred_check_branch
          %323 = sbr.rel (%p321) target = $region16
        $region15: #{tpu_custom_call.1} parent=11 // pred_region
          _
        $region16: #{tpu_custom_call.1} parent=11 // pred_fallthru
          _
        // Predicated region
        $region17: #{tpu_custom_call.1} parent=11 // pred_check
          %p324 = pneg %p170
        $region18: #{tpu_custom_call.1} parent=11 // pred_check_branch
          %326 = sbr.rel (%p324) target = $region20
        $region19: #{tpu_custom_call.1} parent=11 // pred_region
          _
        $region20: #{tpu_custom_call.1} parent=11 // pred_fallthru
          _
        // Predicated region
        $region21: #{tpu_custom_call.1} parent=11 // pred_check
          %p327 = pneg %p191
        $region22: #{tpu_custom_call.1} parent=11 // pred_check_branch
          %329 = sbr.rel (%p327) target = $region24
        $region23: #{tpu_custom_call.1} parent=11 // pred_region
          _
        $region24: #{tpu_custom_call.1} parent=11 // pred_fallthru
          _
        // Predicated region
        $region25: #{tpu_custom_call.1} parent=11 // pred_check
          %p330 = pneg %p212
        $region26: #{tpu_custom_call.1} parent=11 // pred_check_branch
          %332 = sbr.rel (%p330) target = $region28
        $region27: #{tpu_custom_call.1} parent=11 // pred_region
          _
        $region28: #{tpu_custom_call.1} parent=11 // pred_fallthru
          _
        // Predicated region
        $region29: #{tpu_custom_call.1} parent=11 // pred_check
          %p333 = pneg %p233
        $region30: #{tpu_custom_call.1} parent=11 // pred_check_branch
          %335 = sbr.rel (%p333) target = $region32
        $region31: #{tpu_custom_call.1} parent=11 // pred_region
          _
        $region32: #{tpu_custom_call.1} parent=11 // pred_fallthru
          _
        // Predicated region
        $region33: #{tpu_custom_call.1} parent=11 // pred_check
          %p336 = pneg %p254
        $region34: #{tpu_custom_call.1} parent=11 // pred_check_branch
          %338 = sbr.rel (%p336) target = $region36
        $region35: #{tpu_custom_call.1} parent=11 // pred_region
          _
        $region36: #{tpu_custom_call.1} parent=11 // pred_fallthru
          _
      $region12: #{tpu_custom_call.1} parent=5 // pred_fallthru
        _
      %p339 = scmp.lt.s32.totalorder %s24, 2
      // Predicated region
      $region37: #{tpu_custom_call.1} parent=5 // pred_check
        %p340 = pneg %p339
      $region38: #{tpu_custom_call.1} parent=5 // pred_check_branch
        %342 = sbr.rel (%p340) target = $region40
      $region39: #{tpu_custom_call.1} parent=5 // pred_region
        // Predicated region
        $region41: #{tpu_custom_call.1} parent=39 // pred_check
          %p343 = pneg %p44
        $region42: #{tpu_custom_call.1} parent=39 // pred_check_branch
          %345 = sbr.rel (%p343) target = $region44
        $region43: #{tpu_custom_call.1} parent=39 // pred_region
          %p346 = scmp.lt.s32.totalorder %s24, 1
          %s347 = scalar_select %p346, %s24, 1
          %s348 = smul.addr %s347, 16
          %s349 = smul.addr %s348, 4
          %s350 = scalar_lea.vmem %s0, %s349
        $region44: #{tpu_custom_call.1} parent=39 // pred_fallthru
          _
        // Predicated region
        $region45: #{tpu_custom_call.1} parent=39 // pred_check
          %p351 = pneg %p70
        $region46: #{tpu_custom_call.1} parent=39 // pred_check_branch
          %353 = sbr.rel (%p351) target = $region48
        $region47: #{tpu_custom_call.1} parent=39 // pred_region
          %p354 = scmp.lt.s32.totalorder %s24, 1
          %s355 = scalar_select %p354, %s24, 1
          %s356 = smul.addr %s355, 16
          %s357 = smul.addr %s356, 8
          %s358 = scalar_lea.vmem %s1, %s357
        $region48: #{tpu_custom_call.1} parent=39 // pred_fallthru
          _
        // Predicated region
        $region49: #{tpu_custom_call.1} parent=39 // pred_check
          %p359 = pneg %p96
        $region50: #{tpu_custom_call.1} parent=39 // pred_check_branch
          %361 = sbr.rel (%p359) target = $region52
        $region51: #{tpu_custom_call.1} parent=39 // pred_region
          %p362 = scmp.lt.s32.totalorder %s24, 1
          %s363 = scalar_select %p362, %s24, 1
          %s364 = smul.addr %s363, 16
          %s365 = smul.addr %s364, 8
          %s366 = scalar_lea.vmem %s2, %s365
        $region52: #{tpu_custom_call.1} parent=39 // pred_fallthru
          _
        // Predicated region
        $region53: #{tpu_custom_call.1} parent=39 // pred_check
          %p367 = pneg %p122
        $region54: #{tpu_custom_call.1} parent=39 // pred_check_branch
          %369 = sbr.rel (%p367) target = $region56
        $region55: #{tpu_custom_call.1} parent=39 // pred_region
          %p370 = scmp.lt.s32.totalorder %s24, 1
          %s371 = scalar_select %p370, %s24, 1
          %s372 = smul.addr %s371, 16
          %s373 = smul.addr %s372, 8
          %s374 = scalar_lea.vmem %s3, %s373
        $region56: #{tpu_custom_call.1} parent=39 // pred_fallthru
          _
      $region40: #{tpu_custom_call.1} parent=5 // pred_fallthru
        _
      %p375 = scmp.le.s32.totalorder 1, %s24
      %p376 = scmp.lt.s32.totalorder %s24, 3
      %p377 = pnand %p375, %p376
      %p378 = pneg %p377
      // Predicated region
      $region57: #{tpu_custom_call.1} parent=5 // pred_check
        _
      $region58: #{tpu_custom_call.1} parent=5 // pred_check_branch
        %380 = sbr.rel (%p377) target = $region60
      $region59: #{tpu_custom_call.1} parent=5 // pred_region
        %s381 = ssub.s32 %s24, 1
        %p382 = scmp.lt.s32.totalorder %s29, 1
        %s383 = scalar_select %p382, %s29, 1
        %s384 = smul.addr %s383, 16
        %s385 = smul.addr %s384, 4
        %s386 = scalar_lea.vmem %s0, %s385
        %p387 = pneg %p50
        %p388 = pneg %p47
        %p389 = scmp.lt.s32.totalorder %s29, 1
        %s390 = scalar_select %p389, %s29, 1
        %s391 = smul.addr %s390, 16
        %s392 = smul.addr %s391, 8
        %s393 = scalar_lea.vmem %s1, %s392
        %p394 = pneg %p76
        %p395 = pneg %p73
        %p396 = scmp.lt.s32.totalorder %s29, 1
        %s397 = scalar_select %p396, %s29, 1
        %s398 = smul.addr %s397, 16
        %s399 = smul.addr %s398, 8
        %s400 = scalar_lea.vmem %s2, %s399
        %p401 = pneg %p102
        %p402 = pneg %p99
        %p403 = scmp.lt.s32.totalorder %s29, 1
        %s404 = scalar_select %p403, %s29, 1
        %s405 = smul.addr %s404, 16
        %s406 = smul.addr %s405, 8
        %s407 = scalar_lea.vmem %s3, %s406
        %p408 = pneg %p128
        %p409 = pneg %p125
        %p410 = pneg %p149
        %p411 = pneg %p146
        %p412 = pneg %p170
        %p413 = pneg %p167
        %p414 = pneg %p191
        %p415 = pneg %p188
        %p416 = pneg %p212
        %p417 = pneg %p209
        %p418 = pneg %p233
        %p419 = pneg %p230
        %p420 = pneg %p254
        %p421 = pneg %p251
        %p422 = pneg %p280
        %p423 = pneg %p277
        %s424 = sand.u32 %s267, 1
        %s425 = scalar_lea.sflag [#allocation3], %s424
        %s426 = sand.u32 %s267, 1
        %s427 = smul.addr %s426, 4
        %s428 = scalar_lea.vmem [#allocation2], %s427
        %p429 = pneg %p306
        %p430 = pneg %p303
        %s431 = sand.u32 %s293, 1
        %s432 = scalar_lea.sflag [#allocation5], %s431
        %s433 = sand.u32 %s293, 1
        %s434 = smul.addr %s433, 8
        %s435 = scalar_lea.vmem [#allocation4], %s434
        %p436 = scmp.lt.s32.totalorder %s29, 1
        %s437 = scalar_select %p436, %s29, 1
        %s438 = smul.addr %s437, 16
        %s439 = smul.addr %s438, 4
        %s440 = scalar_lea.vmem %s0, %s439
        %p441 = scmp.lt.s32.totalorder %s29, 1
        %s442 = scalar_select %p441, %s29, 1
        %s443 = smul.addr %s442, 16
        %s444 = smul.addr %s443, 8
        %s445 = scalar_lea.vmem %s1, %s444
        %p446 = scmp.lt.s32.totalorder %s29, 1
        %s447 = scalar_select %p446, %s29, 1
        %s448 = smul.addr %s447, 16
        %s449 = smul.addr %s448, 8
        %s450 = scalar_lea.vmem %s2, %s449
        %p451 = scmp.lt.s32.totalorder %s29, 1
        %s452 = scalar_select %p451, %s29, 1
        %s453 = smul.addr %s452, 16
        %s454 = smul.addr %s453, 8
        %s455 = scalar_lea.vmem %s3, %s454
        %v456 = vld [vmem:[%s440] sm:$0xf]
        %v457 = vld [vmem:[%s440 + $0x4] sm:$0xf]
        %v458 = vld [vmem:[%s440 + $0x8] sm:$0xf]
        %v459 = vld [vmem:[%s440 + $0xc] sm:$0xf]
        %v460 = vld [vmem:[%s440 + $0x10] sm:$0xf]
        %v461 = vld [vmem:[%s440 + $0x14] sm:$0xf]
        %v462 = vld [vmem:[%s440 + $0x18] sm:$0xf]
        %v463 = vld [vmem:[%s440 + $0x1c] sm:$0xf]
        %v464 = vld [vmem:[%s440 + $0x20] sm:$0xf]
        %v465 = vld [vmem:[%s440 + $0x24] sm:$0xf]
        %v466 = vld [vmem:[%s440 + $0x28] sm:$0xf]
        %v467 = vld [vmem:[%s440 + $0x2c] sm:$0xf]
        %v468 = vld [vmem:[%s440 + $0x30] sm:$0xf]
        %v469 = vld [vmem:[%s440 + $0x34] sm:$0xf]
        %v470 = vld [vmem:[%s440 + $0x38] sm:$0xf]
        %v471 = vld [vmem:[%s440 + $0x3c] sm:$0xf]
        %v472 = vld [vmem:[%s445] sm:$0xff]
        %v473 = vld [vmem:[%s445 + $0x8] sm:$0xff]
        %v474 = vld [vmem:[%s445 + $0x10] sm:$0xff]
        %v475 = vld [vmem:[%s445 + $0x18] sm:$0xff]
        %v476 = vld [vmem:[%s445 + $0x20] sm:$0xff]
        %v477 = vld [vmem:[%s445 + $0x28] sm:$0xff]
        %v478 = vld [vmem:[%s445 + $0x30] sm:$0xff]
        %v479 = vld [vmem:[%s445 + $0x38] sm:$0xff]
        %v480 = vld [vmem:[%s445 + $0x40] sm:$0xff]
        %v481 = vld [vmem:[%s445 + $0x48] sm:$0xff]
        %v482 = vld [vmem:[%s445 + $0x50] sm:$0xff]
        %v483 = vld [vmem:[%s445 + $0x58] sm:$0xff]
        %v484 = vld [vmem:[%s445 + $0x60] sm:$0xff]
        %v485 = vld [vmem:[%s445 + $0x68] sm:$0xff]
        %v486 = vld [vmem:[%s445 + $0x70] sm:$0xff]
        %v487 = vld [vmem:[%s445 + $0x78] sm:$0xff]
        %v488 = vld [vmem:[%s450] sm:$0xff]
        %v489 = vld [vmem:[%s450 + $0x8] sm:$0xff]
        %v490 = vld [vmem:[%s450 + $0x10] sm:$0xff]
        %v491 = vld [vmem:[%s450 + $0x18] sm:$0xff]
        %v492 = vld [vmem:[%s450 + $0x20] sm:$0xff]
        %v493 = vld [vmem:[%s450 + $0x28] sm:$0xff]
        %v494 = vld [vmem:[%s450 + $0x30] sm:$0xff]
        %v495 = vld [vmem:[%s450 + $0x38] sm:$0xff]
        %v496 = vld [vmem:[%s450 + $0x40] sm:$0xff]
        %v497 = vld [vmem:[%s450 + $0x48] sm:$0xff]
        %v498 = vld [vmem:[%s450 + $0x50] sm:$0xff]
        %v499 = vld [vmem:[%s450 + $0x58] sm:$0xff]
        %v500 = vld [vmem:[%s450 + $0x60] sm:$0xff]
        %v501 = vld [vmem:[%s450 + $0x68] sm:$0xff]
        %v502 = vld [vmem:[%s450 + $0x70] sm:$0xff]
        %v503 = vld [vmem:[%s450 + $0x78] sm:$0xff]
        %v504 = vld [vmem:[%s455] sm:$0xff]
        %v505 = vld [vmem:[%s455 + $0x8] sm:$0xff]
        %v506 = vld [vmem:[%s455 + $0x10] sm:$0xff]
        %v507 = vld [vmem:[%s455 + $0x18] sm:$0xff]
        %v508 = vld [vmem:[%s455 + $0x20] sm:$0xff]
        %v509 = vld [vmem:[%s455 + $0x28] sm:$0xff]
        %v510 = vld [vmem:[%s455 + $0x30] sm:$0xff]
        %v511 = vld [vmem:[%s455 + $0x38] sm:$0xff]
        %v512 = vld [vmem:[%s455 + $0x40] sm:$0xff]
        %v513 = vld [vmem:[%s455 + $0x48] sm:$0xff]
        %v514 = vld [vmem:[%s455 + $0x50] sm:$0xff]
        %v515 = vld [vmem:[%s455 + $0x58] sm:$0xff]
        %v516 = vld [vmem:[%s455 + $0x60] sm:$0xff]
        %v517 = vld [vmem:[%s455 + $0x68] sm:$0xff]
        %v518 = vld [vmem:[%s455 + $0x70] sm:$0xff]
        %v519 = vld [vmem:[%s455 + $0x78] sm:$0xff]
        %v520 = vld [vmem:[%s4] sm:$0xff]
        %vm521 = vcmask 64512
        %v523 = vsel %vm521, %v472, 0
        %v526 = vsel %vm521, %v473, 0
        %v529 = vsel %vm521, %v474, 0
        %v532 = vsel %vm521, %v475, 0
        %v535 = vsel %vm521, %v476, 0
        %v538 = vsel %vm521, %v477, 0
        %v541 = vsel %vm521, %v478, 0
        %v544 = vsel %vm521, %v479, 0
        %v547 = vsel %vm521, %v480, 0
        %v550 = vsel %vm521, %v481, 0
        %v553 = vsel %vm521, %v482, 0
        %v556 = vsel %vm521, %v483, 0
        %v559 = vsel %vm521, %v484, 0
        %v562 = vsel %vm521, %v485, 0
        %v565 = vsel %vm521, %v486, 0
        %v568 = vsel %vm521, %v487, 0
        %570 = vmatpush.msra.mxu0 0.0
        %571 = vmatpush.msra.mxu0 0.0
        %572 = vmatpush.msra.mxu0 0.0
        %573 = vmatpush.msra.mxu0 0.0
        %574 = vmatpush.msra.mxu0 0.0
        %575 = vmatpush.msra.mxu0 0.0
        %576 = vmatpush.msra.mxu0 0.0
        %577 = vmatpush.msra.mxu0 0.0
        %578 = vmatpush.msra.mxu0 0.0
        %579 = vmatpush.msra.mxu0 0.0
        %580 = vmatpush.msra.mxu0 0.0
        %581 = vmatpush.msra.mxu0 0.0
        %582 = vmatpush.msra.mxu0 0.0
        %583 = vmatpush.msra.mxu0 0.0
        %584 = vmatpush.msra.mxu0 0.0
        %585 = vmatpush.msra.mxu0 %v520
        %586 = vmatmul.f32.gmra.mxu0 %v523
        %v587 = vpop.f32.mrf.mxu0
        %v588 = vadd.f32 0.0, %v587
        %589 = vmatmul.f32.gmra.mxu0 %v526
        %v590 = vpop.f32.mrf.mxu0
        %v591 = vadd.f32 0.0, %v590
        %592 = vmatmul.f32.gmra.mxu0 %v529
        %v593 = vpop.f32.mrf.mxu0
        %v594 = vadd.f32 0.0, %v593
        %595 = vmatmul.f32.gmra.mxu0 %v532
        %v596 = vpop.f32.mrf.mxu0
        %v597 = vadd.f32 0.0, %v596
        %598 = vmatmul.f32.gmra.mxu0 %v535
        %v599 = vpop.f32.mrf.mxu0
        %v600 = vadd.f32 0.0, %v599
        %601 = vmatmul.f32.gmra.mxu0 %v538
        %v602 = vpop.f32.mrf.mxu0
        %v603 = vadd.f32 0.0, %v602
        %604 = vmatmul.f32.gmra.mxu0 %v541
        %v605 = vpop.f32.mrf.mxu0
        %v606 = vadd.f32 0.0, %v605
        %607 = vmatmul.f32.gmra.mxu0 %v544
        %v608 = vpop.f32.mrf.mxu0
        %v609 = vadd.f32 0.0, %v608
        %610 = vmatmul.f32.gmra.mxu0 %v547
        %v611 = vpop.f32.mrf.mxu0
        %v612 = vadd.f32 0.0, %v611
        %613 = vmatmul.f32.gmra.mxu0 %v550
        %v614 = vpop.f32.mrf.mxu0
        %v615 = vadd.f32 0.0, %v614
        %616 = vmatmul.f32.gmra.mxu0 %v553
        %v617 = vpop.f32.mrf.mxu0
        %v618 = vadd.f32 0.0, %v617
        %619 = vmatmul.f32.gmra.mxu0 %v556
        %v620 = vpop.f32.mrf.mxu0
        %v621 = vadd.f32 0.0, %v620
        %622 = vmatmul.f32.gmra.mxu0 %v559
        %v623 = vpop.f32.mrf.mxu0
        %v624 = vadd.f32 0.0, %v623
        %625 = vmatmul.f32.gmra.mxu0 %v562
        %v626 = vpop.f32.mrf.mxu0
        %v627 = vadd.f32 0.0, %v626
        %628 = vmatmul.f32.gmra.mxu0 %v565
        %v629 = vpop.f32.mrf.mxu0
        %v630 = vadd.f32 0.0, %v629
        %631 = vmatmul.f32.gmra.mxu0 %v568
        %v632 = vpop.f32.mrf.mxu0
        %v633 = vadd.f32 0.0, %v632
        %634 = vdwg.mxu0
        %636 = vset.pattern.permute.xlu0 0
        %637 = vperm.xlu0 %636, %v488
        %v638 = vpop.permute.xlu0 %637
        %641 = vset.pattern.permute.xlu0 0
        %642 = vperm.xlu0 %641, %v489
        %v643 = vpop.permute.xlu0 %642
        %646 = vset.pattern.permute.xlu0 0
        %647 = vperm.xlu0 %646, %v490
        %v648 = vpop.permute.xlu0 %647
        %651 = vset.pattern.permute.xlu0 0
        %652 = vperm.xlu0 %651, %v491
        %v653 = vpop.permute.xlu0 %652
        %656 = vset.pattern.permute.xlu0 0
        %657 = vperm.xlu0 %656, %v492
        %v658 = vpop.permute.xlu0 %657
        %661 = vset.pattern.permute.xlu0 0
        %662 = vperm.xlu0 %661, %v493
        %v663 = vpop.permute.xlu0 %662
        %666 = vset.pattern.permute.xlu0 0
        %667 = vperm.xlu0 %666, %v494
        %v668 = vpop.permute.xlu0 %667
        %671 = vset.pattern.permute.xlu0 0
        %672 = vperm.xlu0 %671, %v495
        %v673 = vpop.permute.xlu0 %672
        %676 = vset.pattern.permute.xlu0 0
        %677 = vperm.xlu0 %676, %v496
        %v678 = vpop.permute.xlu0 %677
        %681 = vset.pattern.permute.xlu0 0
        %682 = vperm.xlu0 %681, %v497
        %v683 = vpop.permute.xlu0 %682
        %686 = vset.pattern.permute.xlu0 0
        %687 = vperm.xlu0 %686, %v498
        %v688 = vpop.permute.xlu0 %687
        %691 = vset.pattern.permute.xlu0 0
        %692 = vperm.xlu0 %691, %v499
        %v693 = vpop.permute.xlu0 %692
        %696 = vset.pattern.permute.xlu0 0
        %697 = vperm.xlu0 %696, %v500
        %v698 = vpop.permute.xlu0 %697
        %701 = vset.pattern.permute.xlu0 0
        %702 = vperm.xlu0 %701, %v501
        %v703 = vpop.permute.xlu0 %702
        %706 = vset.pattern.permute.xlu0 0
        %707 = vperm.xlu0 %706, %v502
        %v708 = vpop.permute.xlu0 %707
        %711 = vset.pattern.permute.xlu0 0
        %712 = vperm.xlu0 %711, %v503
        %v713 = vpop.permute.xlu0 %712
        %v715 = vmul.f32 %v638, %v588
        %v716 = vmul.f32 %v643, %v591
        %v717 = vmul.f32 %v648, %v594
        %v718 = vmul.f32 %v653, %v597
        %v719 = vmul.f32 %v658, %v600
        %v720 = vmul.f32 %v663, %v603
        %v721 = vmul.f32 %v668, %v606
        %v722 = vmul.f32 %v673, %v609
        %v723 = vmul.f32 %v678, %v612
        %v724 = vmul.f32 %v683, %v615
        %v725 = vmul.f32 %v688, %v618
        %v726 = vmul.f32 %v693, %v621
        %v727 = vmul.f32 %v698, %v624
        %v728 = vmul.f32 %v703, %v627
        %v729 = vmul.f32 %v708, %v630
        %v730 = vmul.f32 %v713, %v633
        %v731 = vpack.c.bf16 %v716, %v715
        %v732 = vpack.c.bf16 %v718, %v717
        %v733 = vpack.c.bf16 %v720, %v719
        %v734 = vpack.c.bf16 %v722, %v721
        %v735 = vpack.c.bf16 %v724, %v723
        %v736 = vpack.c.bf16 %v726, %v725
        %v737 = vpack.c.bf16 %v728, %v727
        %v738 = vpack.c.bf16 %v730, %v729
        %v755 = vunpack.c.l.b16 %v456
        %v756 = vunpack.c.l.b16 %v457
        %v757 = vunpack.c.l.b16 %v458
        %v758 = vunpack.c.l.b16 %v459
        %v759 = vunpack.c.l.b16 %v460
        %v760 = vunpack.c.l.b16 %v461
        %v761 = vunpack.c.l.b16 %v462
        %v762 = vunpack.c.l.b16 %v463
        %v763 = vunpack.c.l.b16 %v464
        %v764 = vunpack.c.l.b16 %v465
        %v765 = vunpack.c.l.b16 %v466
        %v766 = vunpack.c.l.b16 %v467
        %v767 = vunpack.c.l.b16 %v468
        %v768 = vunpack.c.l.b16 %v469
        %v769 = vunpack.c.l.b16 %v470
        %v770 = vunpack.c.l.b16 %v471
        %v771 = vpack.c.b16 %v756, %v755
        %v772 = vpack.c.b16 %v758, %v757
        %v773 = vpack.c.b16 %v760, %v759
        %v774 = vpack.c.b16 %v762, %v761
        %v775 = vpack.c.b16 %v764, %v763
        %v776 = vpack.c.b16 %v766, %v765
        %v777 = vpack.c.b16 %v768, %v767
        %v778 = vpack.c.b16 %v770, %v769
        %787 = vmatpush.bf16.msra.mxu0 %v738
        %788 = vmatpush.bf16.msra.mxu0 %v737
        %789 = vmatpush.bf16.msra.mxu0 %v736
        %790 = vmatpush.bf16.msra.mxu0 %v735
        %791 = vmatpush.bf16.msra.mxu0 %v734
        %792 = vmatpush.bf16.msra.mxu0 %v733
        %793 = vmatpush.bf16.msra.mxu0 %v732
        %794 = vmatpush.bf16.msra.mxu0 %v731
        %795 = vmatmul.bf16.gmra.mxu0 %v771
        %v796 = vpop.f32.mrf.mxu0
        %v797 = vadd.f32 %v715, %v796
        %v798 = vpop.f32.mrf.mxu0
        %v799 = vadd.f32 %v716, %v798
        %800 = vmatmul.bf16.gmra.mxu0 %v772
        %v801 = vpop.f32.mrf.mxu0
        %v802 = vadd.f32 %v717, %v801
        %v803 = vpop.f32.mrf.mxu0
        %v804 = vadd.f32 %v718, %v803
        %805 = vmatmul.bf16.gmra.mxu0 %v773
        %v806 = vpop.f32.mrf.mxu0
        %v807 = vadd.f32 %v719, %v806
        %v808 = vpop.f32.mrf.mxu0
        %v809 = vadd.f32 %v720, %v808
        %810 = vmatmul.bf16.gmra.mxu0 %v774
        %v811 = vpop.f32.mrf.mxu0
        %v812 = vadd.f32 %v721, %v811
        %v813 = vpop.f32.mrf.mxu0
        %v814 = vadd.f32 %v722, %v813
        %815 = vmatmul.bf16.gmra.mxu0 %v775
        %v816 = vpop.f32.mrf.mxu0
        %v817 = vadd.f32 %v723, %v816
        %v818 = vpop.f32.mrf.mxu0
        %v819 = vadd.f32 %v724, %v818
        %820 = vmatmul.bf16.gmra.mxu0 %v776
        %v821 = vpop.f32.mrf.mxu0
        %v822 = vadd.f32 %v725, %v821
        %v823 = vpop.f32.mrf.mxu0
        %v824 = vadd.f32 %v726, %v823
        %825 = vmatmul.bf16.gmra.mxu0 %v777
        %v826 = vpop.f32.mrf.mxu0
        %v827 = vadd.f32 %v727, %v826
        %v828 = vpop.f32.mrf.mxu0
        %v829 = vadd.f32 %v728, %v828
        %830 = vmatmul.bf16.gmra.mxu0 %v778
        %v831 = vpop.f32.mrf.mxu0
        %v832 = vadd.f32 %v729, %v831
        %v833 = vpop.f32.mrf.mxu0
        %v834 = vadd.f32 %v730, %v833
        %835 = vdwg.mxu0
        %v836 = vmul.f32 %v638, %v797
        %v837 = vmul.f32 %v643, %v799
        %v838 = vmul.f32 %v648, %v802
        %v839 = vmul.f32 %v653, %v804
        %v840 = vmul.f32 %v658, %v807
        %v841 = vmul.f32 %v663, %v809
        %v842 = vmul.f32 %v668, %v812
        %v843 = vmul.f32 %v673, %v814
        %v844 = vmul.f32 %v678, %v817
        %v845 = vmul.f32 %v683, %v819
        %v846 = vmul.f32 %v688, %v822
        %v847 = vmul.f32 %v693, %v824
        %v848 = vmul.f32 %v698, %v827
        %v849 = vmul.f32 %v703, %v829
        %v850 = vmul.f32 %v708, %v832
        %v851 = vmul.f32 %v713, %v834
        %v852 = vld [vmem:[%s5] sm:$0x1]
        %v854 = vperm.slane %v852, 0
        %v856 = vadd.f32 %v836, %v854
        %v857 = vadd.f32 %v837, %v854
        %v858 = vadd.f32 %v838, %v854
        %v859 = vadd.f32 %v839, %v854
        %v860 = vadd.f32 %v840, %v854
        %v861 = vadd.f32 %v841, %v854
        %v862 = vadd.f32 %v842, %v854
        %v863 = vadd.f32 %v843, %v854
        %v864 = vadd.f32 %v844, %v854
        %v865 = vadd.f32 %v845, %v854
        %v866 = vadd.f32 %v846, %v854
        %v867 = vadd.f32 %v847, %v854
        %v868 = vadd.f32 %v848, %v854
        %v869 = vadd.f32 %v849, %v854
        %v870 = vadd.f32 %v850, %v854
        %v871 = vadd.f32 %v851, %v854
        %v872 = vmax.f32 %v856, 0.0
        %v873 = vmax.f32 %v857, 0.0
        %v874 = vmax.f32 %v858, 0.0
        %v875 = vmax.f32 %v859, 0.0
        %v876 = vmax.f32 %v860, 0.0
        %v877 = vmax.f32 %v861, 0.0
        %v878 = vmax.f32 %v862, 0.0
        %v879 = vmax.f32 %v863, 0.0
        %v880 = vmax.f32 %v864, 0.0
        %v881 = vmax.f32 %v865, 0.0
        %v882 = vmax.f32 %v866, 0.0
        %v883 = vmax.f32 %v867, 0.0
        %v884 = vmax.f32 %v868, 0.0
        %v885 = vmax.f32 %v869, 0.0
        %v886 = vmax.f32 %v870, 0.0
        %v887 = vmax.f32 %v871, 0.0
        %v888 = vld [vmem:[%s6] sm:$0xff]
        %v889 = vld [vmem:[%s6 + $0x8] sm:$0xff]
        %v890 = vld [vmem:[%s6 + $0x10] sm:$0xff]
        %v891 = vld [vmem:[%s6 + $0x18] sm:$0xff]
        %vm892 = vcmask 261120
        %v894 = vsel %vm892, %v872, 0
        %v897 = vsel %vm892, %v873, 0
        %v900 = vsel %vm892, %v874, 0
        %v903 = vsel %vm892, %v875, 0
        %v906 = vsel %vm892, %v876, 0
        %v909 = vsel %vm892, %v877, 0
        %v912 = vsel %vm892, %v878, 0
        %v915 = vsel %vm892, %v879, 0
        %v918 = vsel %vm892, %v880, 0
        %v921 = vsel %vm892, %v881, 0
        %v924 = vsel %vm892, %v882, 0
        %v927 = vsel %vm892, %v883, 0
        %v930 = vsel %vm892, %v884, 0
        %v933 = vsel %vm892, %v885, 0
        %v936 = vsel %vm892, %v886, 0
        %v939 = vsel %vm892, %v887, 0
        %941 = vmatpush.msra.mxu0 0.0
        %942 = vmatpush.msra.mxu0 0.0
        %943 = vmatpush.msra.mxu0 0.0
        %944 = vmatpush.msra.mxu0 0.0
        %945 = vmatpush.msra.mxu0 0.0
        %946 = vmatpush.msra.mxu0 0.0
        %947 = vmatpush.msra.mxu0 0.0
        %948 = vmatpush.msra.mxu0 0.0
        %949 = vmatpush.msra.mxu0 0.0
        %950 = vmatpush.msra.mxu0 0.0
        %951 = vmatpush.msra.mxu0 0.0
        %952 = vmatpush.msra.mxu0 0.0
        %953 = vmatpush.msra.mxu0 %v891
        %954 = vmatpush.msra.mxu0 %v890
        %955 = vmatpush.msra.mxu0 %v889
        %956 = vmatpush.msra.mxu0 %v888
        %957 = vmatmul.f32.gmra.mxu0 %v894
        %v958 = vpop.f32.mrf.mxu0
        %v959 = vadd.f32 0.0, %v958
        %960 = vmatmul.f32.gmra.mxu0 %v897
        %v961 = vpop.f32.mrf.mxu0
        %v962 = vadd.f32 0.0, %v961
        %963 = vmatmul.f32.gmra.mxu0 %v900
        %v964 = vpop.f32.mrf.mxu0
        %v965 = vadd.f32 0.0, %v964
        %966 = vmatmul.f32.gmra.mxu0 %v903
        %v967 = vpop.f32.mrf.mxu0
        %v968 = vadd.f32 0.0, %v967
        %969 = vmatmul.f32.gmra.mxu0 %v906
        %v970 = vpop.f32.mrf.mxu0
        %v971 = vadd.f32 0.0, %v970
        %972 = vmatmul.f32.gmra.mxu0 %v909
        %v973 = vpop.f32.mrf.mxu0
        %v974 = vadd.f32 0.0, %v973
        %975 = vmatmul.f32.gmra.mxu0 %v912
        %v976 = vpop.f32.mrf.mxu0
        %v977 = vadd.f32 0.0, %v976
        %978 = vmatmul.f32.gmra.mxu0 %v915
        %v979 = vpop.f32.mrf.mxu0
        %v980 = vadd.f32 0.0, %v979
        %981 = vmatmul.f32.gmra.mxu0 %v918
        %v982 = vpop.f32.mrf.mxu0
        %v983 = vadd.f32 0.0, %v982
        %984 = vmatmul.f32.gmra.mxu0 %v921
        %v985 = vpop.f32.mrf.mxu0
        %v986 = vadd.f32 0.0, %v985
        %987 = vmatmul.f32.gmra.mxu0 %v924
        %v988 = vpop.f32.mrf.mxu0
        %v989 = vadd.f32 0.0, %v988
        %990 = vmatmul.f32.gmra.mxu0 %v927
        %v991 = vpop.f32.mrf.mxu0
        %v992 = vadd.f32 0.0, %v991
        %993 = vmatmul.f32.gmra.mxu0 %v930
        %v994 = vpop.f32.mrf.mxu0
        %v995 = vadd.f32 0.0, %v994
        %996 = vmatmul.f32.gmra.mxu0 %v933
        %v997 = vpop.f32.mrf.mxu0
        %v998 = vadd.f32 0.0, %v997
        %999 = vmatmul.f32.gmra.mxu0 %v936
        %v1000 = vpop.f32.mrf.mxu0
        %v1001 = vadd.f32 0.0, %v1000
        %1002 = vmatmul.f32.gmra.mxu0 %v939
        %v1003 = vpop.f32.mrf.mxu0
        %v1004 = vadd.f32 0.0, %v1003
        %1005 = vdwg.mxu0
        %v1006 = vmul.f32 %v638, %v959
        %v1007 = vmul.f32 %v643, %v962
        %v1008 = vmul.f32 %v648, %v965
        %v1009 = vmul.f32 %v653, %v968
        %v1010 = vmul.f32 %v658, %v971
        %v1011 = vmul.f32 %v663, %v974
        %v1012 = vmul.f32 %v668, %v977
        %v1013 = vmul.f32 %v673, %v980
        %v1014 = vmul.f32 %v678, %v983
        %v1015 = vmul.f32 %v683, %v986
        %v1016 = vmul.f32 %v688, %v989
        %v1017 = vmul.f32 %v693, %v992
        %v1018 = vmul.f32 %v698, %v995
        %v1019 = vmul.f32 %v703, %v998
        %v1020 = vmul.f32 %v708, %v1001
        %v1021 = vmul.f32 %v713, %v1004
        %v1022 = vpack.c.bf16 %v1007, %v1006
        %v1023 = vpack.c.bf16 %v1009, %v1008
        %v1024 = vpack.c.bf16 %v1011, %v1010
        %v1025 = vpack.c.bf16 %v1013, %v1012
        %v1026 = vpack.c.bf16 %v1015, %v1014
        %v1027 = vpack.c.bf16 %v1017, %v1016
        %v1028 = vpack.c.bf16 %v1019, %v1018
        %v1029 = vpack.c.bf16 %v1021, %v1020
        %1030 = vmatpush.bf16.msra.mxu0 %v1029
        %1031 = vmatpush.bf16.msra.mxu0 %v1028
        %1032 = vmatpush.bf16.msra.mxu0 %v1027
        %1033 = vmatpush.bf16.msra.mxu0 %v1026
        %1034 = vmatpush.bf16.msra.mxu0 %v1025
        %1035 = vmatpush.bf16.msra.mxu0 %v1024
        %1036 = vmatpush.bf16.msra.mxu0 %v1023
        %1037 = vmatpush.bf16.msra.mxu0 %v1022
        %1038 = vmatmul.bf16.gmra.mxu0 %v771
        %v1039 = vpop.f32.mrf.mxu0
        %v1040 = vadd.f32 %v1006, %v1039
        %v1041 = vpop.f32.mrf.mxu0
        %v1042 = vadd.f32 %v1007, %v1041
        %1043 = vmatmul.bf16.gmra.mxu0 %v772
        %v1044 = vpop.f32.mrf.mxu0
        %v1045 = vadd.f32 %v1008, %v1044
        %v1046 = vpop.f32.mrf.mxu0
        %v1047 = vadd.f32 %v1009, %v1046
        %1048 = vmatmul.bf16.gmra.mxu0 %v773
        %v1049 = vpop.f32.mrf.mxu0
        %v1050 = vadd.f32 %v1010, %v1049
        %v1051 = vpop.f32.mrf.mxu0
        %v1052 = vadd.f32 %v1011, %v1051
        %1053 = vmatmul.bf16.gmra.mxu0 %v774
        %v1054 = vpop.f32.mrf.mxu0
        %v1055 = vadd.f32 %v1012, %v1054
        %v1056 = vpop.f32.mrf.mxu0
        %v1057 = vadd.f32 %v1013, %v1056
        %1058 = vmatmul.bf16.gmra.mxu0 %v775
        %v1059 = vpop.f32.mrf.mxu0
        %v1060 = vadd.f32 %v1014, %v1059
        %v1061 = vpop.f32.mrf.mxu0
        %v1062 = vadd.f32 %v1015, %v1061
        %1063 = vmatmul.bf16.gmra.mxu0 %v776
        %v1064 = vpop.f32.mrf.mxu0
        %v1065 = vadd.f32 %v1016, %v1064
        %v1066 = vpop.f32.mrf.mxu0
        %v1067 = vadd.f32 %v1017, %v1066
        %1068 = vmatmul.bf16.gmra.mxu0 %v777
        %v1069 = vpop.f32.mrf.mxu0
        %v1070 = vadd.f32 %v1018, %v1069
        %v1071 = vpop.f32.mrf.mxu0
        %v1072 = vadd.f32 %v1019, %v1071
        %1073 = vmatmul.bf16.gmra.mxu0 %v778
        %v1074 = vpop.f32.mrf.mxu0
        %v1075 = vadd.f32 %v1020, %v1074
        %v1076 = vpop.f32.mrf.mxu0
        %v1077 = vadd.f32 %v1021, %v1076
        %1078 = vdwg.mxu0
        %v1079 = vmul.f32 %v638, %v1040
        %v1080 = vmul.f32 %v643, %v1042
        %v1081 = vmul.f32 %v648, %v1045
        %v1082 = vmul.f32 %v653, %v1047
        %v1083 = vmul.f32 %v658, %v1050
        %v1084 = vmul.f32 %v663, %v1052
        %v1085 = vmul.f32 %v668, %v1055
        %v1086 = vmul.f32 %v673, %v1057
        %v1087 = vmul.f32 %v678, %v1060
        %v1088 = vmul.f32 %v683, %v1062
        %v1089 = vmul.f32 %v688, %v1065
        %v1090 = vmul.f32 %v693, %v1067
        %v1091 = vmul.f32 %v698, %v1070
        %v1092 = vmul.f32 %v703, %v1072
        %v1093 = vmul.f32 %v708, %v1075
        %v1094 = vmul.f32 %v713, %v1077
        %v1095 = vld [vmem:[%s7] sm:$0x1]
        %v1097 = vperm.slane %v1095, 0
        %v1099 = vadd.f32 %v1079, %v1097
        %v1100 = vadd.f32 %v1080, %v1097
        %v1101 = vadd.f32 %v1081, %v1097
        %v1102 = vadd.f32 %v1082, %v1097
        %v1103 = vadd.f32 %v1083, %v1097
        %v1104 = vadd.f32 %v1084, %v1097
        %v1105 = vadd.f32 %v1085, %v1097
        %v1106 = vadd.f32 %v1086, %v1097
        %v1107 = vadd.f32 %v1087, %v1097
        %v1108 = vadd.f32 %v1088, %v1097
        %v1109 = vadd.f32 %v1089, %v1097
        %v1110 = vadd.f32 %v1090, %v1097
        %v1111 = vadd.f32 %v1091, %v1097
        %v1112 = vadd.f32 %v1092, %v1097
        %v1113 = vadd.f32 %v1093, %v1097
        %v1114 = vadd.f32 %v1094, %v1097
        %v1115 = vmax.f32 %v1099, 0.0
        %v1116 = vmax.f32 %v1100, 0.0
        %v1117 = vmax.f32 %v1101, 0.0
        %v1118 = vmax.f32 %v1102, 0.0
        %v1119 = vmax.f32 %v1103, 0.0
        %v1120 = vmax.f32 %v1104, 0.0
        %v1121 = vmax.f32 %v1105, 0.0
        %v1122 = vmax.f32 %v1106, 0.0
        %v1123 = vmax.f32 %v1107, 0.0
        %v1124 = vmax.f32 %v1108, 0.0
        %v1125 = vmax.f32 %v1109, 0.0
        %v1126 = vmax.f32 %v1110, 0.0
        %v1127 = vmax.f32 %v1111, 0.0
        %v1128 = vmax.f32 %v1112, 0.0
        %v1129 = vmax.f32 %v1113, 0.0
        %v1130 = vmax.f32 %v1114, 0.0
        %v1131 = vld [vmem:[%s8] sm:$0xff]
        %v1132 = vld [vmem:[%s8 + $0x8] sm:$0xff]
        %v1133 = vld [vmem:[%s8 + $0x10] sm:$0xff]
        %v1134 = vld [vmem:[%s8 + $0x18] sm:$0xff]
        %v1135 = vld [vmem:[%s9] sm:$0x1]
        %v1137 = vperm.slane %v1135, 0
        %v1140 = vsel %vm892, %v1115, 0
        %v1143 = vsel %vm892, %v1116, 0
        %v1146 = vsel %vm892, %v1117, 0
        %v1149 = vsel %vm892, %v1118, 0
        %v1152 = vsel %vm892, %v1119, 0
        %v1155 = vsel %vm892, %v1120, 0
        %v1158 = vsel %vm892, %v1121, 0
        %v1161 = vsel %vm892, %v1122, 0
        %v1164 = vsel %vm892, %v1123, 0
        %v1167 = vsel %vm892, %v1124, 0
        %v1170 = vsel %vm892, %v1125, 0
        %v1173 = vsel %vm892, %v1126, 0
        %v1176 = vsel %vm892, %v1127, 0
        %v1179 = vsel %vm892, %v1128, 0
        %v1182 = vsel %vm892, %v1129, 0
        %v1185 = vsel %vm892, %v1130, 0
        %1187 = vmatpush.msra.mxu0 0.0
        %1188 = vmatpush.msra.mxu0 0.0
        %1189 = vmatpush.msra.mxu0 0.0
        %1190 = vmatpush.msra.mxu0 0.0
        %1191 = vmatpush.msra.mxu0 0.0
        %1192 = vmatpush.msra.mxu0 0.0
        %1193 = vmatpush.msra.mxu0 0.0
        %1194 = vmatpush.msra.mxu0 0.0
        %1195 = vmatpush.msra.mxu0 0.0
        %1196 = vmatpush.msra.mxu0 0.0
        %1197 = vmatpush.msra.mxu0 0.0
        %1198 = vmatpush.msra.mxu0 0.0
        %1199 = vmatpush.msra.mxu0 %v1134
        %1200 = vmatpush.msra.mxu0 %v1133
        %1201 = vmatpush.msra.mxu0 %v1132
        %1202 = vmatpush.msra.mxu0 %v1131
        %1203 = vmatmul.f32.gmra.mxu0 %v1140
        %v1204 = vpop.f32.mrf.mxu0
        %v1205 = vadd.f32 %v1137, %v1204
        %1206 = vmatmul.f32.gmra.mxu0 %v1143
        %v1207 = vpop.f32.mrf.mxu0
        %v1208 = vadd.f32 %v1137, %v1207
        %1209 = vmatmul.f32.gmra.mxu0 %v1146
        %v1210 = vpop.f32.mrf.mxu0
        %v1211 = vadd.f32 %v1137, %v1210
        %1212 = vmatmul.f32.gmra.mxu0 %v1149
        %v1213 = vpop.f32.mrf.mxu0
        %v1214 = vadd.f32 %v1137, %v1213
        %1215 = vmatmul.f32.gmra.mxu0 %v1152
        %v1216 = vpop.f32.mrf.mxu0
        %v1217 = vadd.f32 %v1137, %v1216
        %1218 = vmatmul.f32.gmra.mxu0 %v1155
        %v1219 = vpop.f32.mrf.mxu0
        %v1220 = vadd.f32 %v1137, %v1219
        %1221 = vmatmul.f32.gmra.mxu0 %v1158
        %v1222 = vpop.f32.mrf.mxu0
        %v1223 = vadd.f32 %v1137, %v1222
        %1224 = vmatmul.f32.gmra.mxu0 %v1161
        %v1225 = vpop.f32.mrf.mxu0
        %v1226 = vadd.f32 %v1137, %v1225
        %1227 = vmatmul.f32.gmra.mxu0 %v1164
        %v1228 = vpop.f32.mrf.mxu0
        %v1229 = vadd.f32 %v1137, %v1228
        %1230 = vmatmul.f32.gmra.mxu0 %v1167
        %v1231 = vpop.f32.mrf.mxu0
        %v1232 = vadd.f32 %v1137, %v1231
        %1233 = vmatmul.f32.gmra.mxu0 %v1170
        %v1234 = vpop.f32.mrf.mxu0
        %v1235 = vadd.f32 %v1137, %v1234
        %1236 = vmatmul.f32.gmra.mxu0 %v1173
        %v1237 = vpop.f32.mrf.mxu0
        %v1238 = vadd.f32 %v1137, %v1237
        %1239 = vmatmul.f32.gmra.mxu0 %v1176
        %v1240 = vpop.f32.mrf.mxu0
        %v1241 = vadd.f32 %v1137, %v1240
        %1242 = vmatmul.f32.gmra.mxu0 %v1179
        %v1243 = vpop.f32.mrf.mxu0
        %v1244 = vadd.f32 %v1137, %v1243
        %1245 = vmatmul.f32.gmra.mxu0 %v1182
        %v1246 = vpop.f32.mrf.mxu0
        %v1247 = vadd.f32 %v1137, %v1246
        %1248 = vmatmul.f32.gmra.mxu0 %v1185
        %v1249 = vpop.f32.mrf.mxu0
        %v1250 = vadd.f32 %v1137, %v1249
        %1251 = vdwg.mxu0
        %vm1252 = vcmask 31744
        %v1253 = vsel %vm1252, %v1205, -inf
        %1254 = vmax.xlane.f32.xlu0 %v1253
        %v1255 = vpop.xlane.xlu0 %1254
        %v1256 = vsel %vm1252, %v1208, -inf
        %1257 = vmax.xlane.f32.xlu0 %v1256
        %v1258 = vpop.xlane.xlu0 %1257
        %v1259 = vsel %vm1252, %v1211, -inf
        %1260 = vmax.xlane.f32.xlu0 %v1259
        %v1261 = vpop.xlane.xlu0 %1260
        %v1262 = vsel %vm1252, %v1214, -inf
        %1263 = vmax.xlane.f32.xlu0 %v1262
        %v1264 = vpop.xlane.xlu0 %1263
        %v1265 = vsel %vm1252, %v1217, -inf
        %1266 = vmax.xlane.f32.xlu0 %v1265
        %v1267 = vpop.xlane.xlu0 %1266
        %v1268 = vsel %vm1252, %v1220, -inf
        %1269 = vmax.xlane.f32.xlu0 %v1268
        %v1270 = vpop.xlane.xlu0 %1269
        %v1271 = vsel %vm1252, %v1223, -inf
        %1272 = vmax.xlane.f32.xlu0 %v1271
        %v1273 = vpop.xlane.xlu0 %1272
        %v1274 = vsel %vm1252, %v1226, -inf
        %1275 = vmax.xlane.f32.xlu0 %v1274
        %v1276 = vpop.xlane.xlu0 %1275
        %v1277 = vsel %vm1252, %v1229, -inf
        %1278 = vmax.xlane.f32.xlu0 %v1277
        %v1279 = vpop.xlane.xlu0 %1278
        %v1280 = vsel %vm1252, %v1232, -inf
        %1281 = vmax.xlane.f32.xlu0 %v1280
        %v1282 = vpop.xlane.xlu0 %1281
        %v1283 = vsel %vm1252, %v1235, -inf
        %1284 = vmax.xlane.f32.xlu0 %v1283
        %v1285 = vpop.xlane.xlu0 %1284
        %v1286 = vsel %vm1252, %v1238, -inf
        %1287 = vmax.xlane.f32.xlu0 %v1286
        %v1288 = vpop.xlane.xlu0 %1287
        %v1289 = vsel %vm1252, %v1241, -inf
        %1290 = vmax.xlane.f32.xlu0 %v1289
        %v1291 = vpop.xlane.xlu0 %1290
        %v1292 = vsel %vm1252, %v1244, -inf
        %1293 = vmax.xlane.f32.xlu0 %v1292
        %v1294 = vpop.xlane.xlu0 %1293
        %v1295 = vsel %vm1252, %v1247, -inf
        %1296 = vmax.xlane.f32.xlu0 %v1295
        %v1297 = vpop.xlane.xlu0 %1296
        %v1298 = vsel %vm1252, %v1250, -inf
        %1299 = vmax.xlane.f32.xlu0 %v1298
        %v1300 = vpop.xlane.xlu0 %1299
        %v1301 = vsub.f32 %v1205, %v1255
        %v1302 = vsub.f32 %v1208, %v1258
        %v1303 = vsub.f32 %v1211, %v1261
        %v1304 = vsub.f32 %v1214, %v1264
        %v1305 = vsub.f32 %v1217, %v1267
        %v1306 = vsub.f32 %v1220, %v1270
        %v1307 = vsub.f32 %v1223, %v1273
        %v1308 = vsub.f32 %v1226, %v1276
        %v1309 = vsub.f32 %v1229, %v1279
        %v1310 = vsub.f32 %v1232, %v1282
        %v1311 = vsub.f32 %v1235, %v1285
        %v1312 = vsub.f32 %v1238, %v1288
        %v1313 = vsub.f32 %v1241, %v1291
        %v1314 = vsub.f32 %v1244, %v1294
        %v1315 = vsub.f32 %v1247, %v1297
        %v1316 = vsub.f32 %v1250, %v1300
        %v1317 = vmul.f32 %v1301, 1.442695
        %v1318 = vpow.pop %v1317
        %v1319 = vmul.f32 %v1302, 1.442695
        %v1320 = vpow.pop %v1319
        %v1321 = vmul.f32 %v1303, 1.442695
        %v1322 = vpow.pop %v1321
        %v1323 = vmul.f32 %v1304, 1.442695
        %v1324 = vpow.pop %v1323
        %v1325 = vmul.f32 %v1305, 1.442695
        %v1326 = vpow.pop %v1325
        %v1327 = vmul.f32 %v1306, 1.442695
        %v1328 = vpow.pop %v1327
        %v1329 = vmul.f32 %v1307, 1.442695
        %v1330 = vpow.pop %v1329
        %v1331 = vmul.f32 %v1308, 1.442695
        %v1332 = vpow.pop %v1331
        %v1333 = vmul.f32 %v1309, 1.442695
        %v1334 = vpow.pop %v1333
        %v1335 = vmul.f32 %v1310, 1.442695
        %v1336 = vpow.pop %v1335
        %v1337 = vmul.f32 %v1311, 1.442695
        %v1338 = vpow.pop %v1337
        %v1339 = vmul.f32 %v1312, 1.442695
        %v1340 = vpow.pop %v1339
        %v1341 = vmul.f32 %v1313, 1.442695
        %v1342 = vpow.pop %v1341
        %v1343 = vmul.f32 %v1314, 1.442695
        %v1344 = vpow.pop %v1343
        %v1345 = vmul.f32 %v1315, 1.442695
        %v1346 = vpow.pop %v1345
        %v1347 = vmul.f32 %v1316, 1.442695
        %v1348 = vpow.pop %v1347
        %v1349 = vsel %vm1252, %v1318, 0.0
        %1350 = vadd.xlane.f32.xlu0 %v1349
        %v1351 = vpop.xlane.xlu0 %1350
        %v1352 = vsel %vm1252, %v1320, 0.0
        %1353 = vadd.xlane.f32.xlu0 %v1352
        %v1354 = vpop.xlane.xlu0 %1353
        %v1355 = vsel %vm1252, %v1322, 0.0
        %1356 = vadd.xlane.f32.xlu0 %v1355
        %v1357 = vpop.xlane.xlu0 %1356
        %v1358 = vsel %vm1252, %v1324, 0.0
        %1359 = vadd.xlane.f32.xlu0 %v1358
        %v1360 = vpop.xlane.xlu0 %1359
        %v1361 = vsel %vm1252, %v1326, 0.0
        %1362 = vadd.xlane.f32.xlu0 %v1361
        %v1363 = vpop.xlane.xlu0 %1362
        %v1364 = vsel %vm1252, %v1328, 0.0
        %1365 = vadd.xlane.f32.xlu0 %v1364
        %v1366 = vpop.xlane.xlu0 %1365
        %v1367 = vsel %vm1252, %v1330, 0.0
        %1368 = vadd.xlane.f32.xlu0 %v1367
        %v1369 = vpop.xlane.xlu0 %1368
        %v1370 = vsel %vm1252, %v1332, 0.0
        %1371 = vadd.xlane.f32.xlu0 %v1370
        %v1372 = vpop.xlane.xlu0 %1371
        %v1373 = vsel %vm1252, %v1334, 0.0
        %1374 = vadd.xlane.f32.xlu0 %v1373
        %v1375 = vpop.xlane.xlu0 %1374
        %v1376 = vsel %vm1252, %v1336, 0.0
        %1377 = vadd.xlane.f32.xlu0 %v1376
        %v1378 = vpop.xlane.xlu0 %1377
        %v1379 = vsel %vm1252, %v1338, 0.0
        %1380 = vadd.xlane.f32.xlu0 %v1379
        %v1381 = vpop.xlane.xlu0 %1380
        %v1382 = vsel %vm1252, %v1340, 0.0
        %1383 = vadd.xlane.f32.xlu0 %v1382
        %v1384 = vpop.xlane.xlu0 %1383
        %v1385 = vsel %vm1252, %v1342, 0.0
        %1386 = vadd.xlane.f32.xlu0 %v1385
        %v1387 = vpop.xlane.xlu0 %1386
        %v1388 = vsel %vm1252, %v1344, 0.0
        %1389 = vadd.xlane.f32.xlu0 %v1388
        %v1390 = vpop.xlane.xlu0 %1389
        %v1391 = vsel %vm1252, %v1346, 0.0
        %1392 = vadd.xlane.f32.xlu0 %v1391
        %v1393 = vpop.xlane.xlu0 %1392
        %v1394 = vsel %vm1252, %v1348, 0.0
        %1395 = vadd.xlane.f32.xlu0 %v1394
        %v1396 = vpop.xlane.xlu0 %1395
        %v1397 = vrcp.pop %v1351
        %v1398 = vrcp.pop %v1354
        %v1399 = vrcp.pop %v1357
        %v1400 = vrcp.pop %v1360
        %v1401 = vrcp.pop %v1363
        %v1402 = vrcp.pop %v1366
        %v1403 = vrcp.pop %v1369
        %v1404 = vrcp.pop %v1372
        %v1405 = vrcp.pop %v1375
        %v1406 = vrcp.pop %v1378
        %v1407 = vrcp.pop %v1381
        %v1408 = vrcp.pop %v1384
        %v1409 = vrcp.pop %v1387
        %v1410 = vrcp.pop %v1390
        %v1411 = vrcp.pop %v1393
        %v1412 = vrcp.pop %v1396
        %v1413 = vmul.f32 %v1318, %v1397
        %v1414 = vmul.f32 %v1320, %v1398
        %v1415 = vmul.f32 %v1322, %v1399
        %v1416 = vmul.f32 %v1324, %v1400
        %v1417 = vmul.f32 %v1326, %v1401
        %v1418 = vmul.f32 %v1328, %v1402
        %v1419 = vmul.f32 %v1330, %v1403
        %v1420 = vmul.f32 %v1332, %v1404
        %v1421 = vmul.f32 %v1334, %v1405
        %v1422 = vmul.f32 %v1336, %v1406
        %v1423 = vmul.f32 %v1338, %v1407
        %v1424 = vmul.f32 %v1340, %v1408
        %v1425 = vmul.f32 %v1342, %v1409
        %v1426 = vmul.f32 %v1344, %v1410
        %v1427 = vmul.f32 %v1346, %v1411
        %v1428 = vmul.f32 %v1348, %v1412
        %1429 = vxpose.xlu0.b32.start [1/16] %v1413, 128
        %1430 = vxpose.xlu0.b32.cont [2/16] %v1414, 128
        %1431 = vxpose.xlu0.b32.cont [3/16] %v1415, 128
        %1432 = vxpose.xlu0.b32.cont [4/16] %v1416, 128
        %1433 = vxpose.xlu0.b32.cont [5/16] %v1417, 128
        %1434 = vxpose.xlu0.b32.cont [6/16] %v1418, 128
        %1435 = vxpose.xlu0.b32.cont [7/16] %v1419, 128
        %1436 = vxpose.xlu0.b32.cont [8/16] %v1420, 128
        %1437 = vxpose.xlu0.b32.cont [9/16] %v1421, 128
        %1438 = vxpose.xlu0.b32.cont [10/16] %v1422, 128
        %1439 = vxpose.xlu0.b32.cont [11/16] %v1423, 128
        %1440 = vxpose.xlu0.b32.cont [12/16] %v1424, 128
        %1441 = vxpose.xlu0.b32.cont [13/16] %v1425, 128
        %1442 = vxpose.xlu0.b32.cont [14/16] %v1426, 128
        %1443 = vxpose.xlu0.b32.cont [15/16] %v1427, 128
        %1444 = vxpose.xlu0.b32.end [16/16] %v1428, 128
        %v1445 = vpop.trf.xlu0
        %v1446 = vpop.trf.xlu0
        %v1447 = vpop.trf.xlu0
        %v1448 = vpop.trf.xlu0
        %v1449 = vpop.trf.xlu0
        %v1450 = vpop.trf.xlu0
        %v1451 = vpop.trf.xlu0
        %v1452 = vpop.trf.xlu0
        %v1453 = vpop.trf.xlu0
        %v1454 = vpop.trf.xlu0
        %v1455 = vpop.trf.xlu0
        %v1456 = vpop.trf.xlu0
        %v1457 = vpop.trf.xlu0
        %v1458 = vpop.trf.xlu0
        %v1459 = vpop.trf.xlu0
        %v1460 = vpop.trf.xlu0
        %1461 = vst [vmem:[%s428] sm:$0xf] %v1445
        %v1462 = vlaneseq
        %v1463 = vshrl.u32 %v1462, 7
        %v1464 = vlaneseq
        %v1465 = vand.u32 %v1464, 127
        %v1466 = vmul.u32 %v1463, 16
        %vm1467 = vcmp.ge.s32.totalorder %v1465, %v1466
        %v1468 = vadd.s32 %v1466, 16
        %vm1469 = vcmp.lt.s32.totalorder %v1465, %v1468
        %vm1470 = vmand %vm1467, %vm1469
        %v1471 = vsel %vm1470, 1, 0
        %v1472 = vcvt.s32.f32 %v1471
        %v1473 = vpack.c.bf16 %v1414, %v1413
        %v1474 = vpack.c.bf16 %v1416, %v1415
        %v1475 = vpack.c.bf16 %v1418, %v1417
        %v1476 = vpack.c.bf16 %v1420, %v1419
        %v1477 = vpack.c.bf16 %v1422, %v1421
        %v1478 = vpack.c.bf16 %v1424, %v1423
        %v1479 = vpack.c.bf16 %v1426, %v1425
        %v1480 = vpack.c.bf16 %v1428, %v1427
        %1481 = vmatpush.bf16.msra.mxu0 %v1480
        %1482 = vmatpush.bf16.msra.mxu0 %v1479
        %1483 = vmatpush.bf16.msra.mxu0 %v1478
        %1484 = vmatpush.bf16.msra.mxu0 %v1477
        %1485 = vmatpush.bf16.msra.mxu0 %v1476
        %1486 = vmatpush.bf16.msra.mxu0 %v1475
        %1487 = vmatpush.bf16.msra.mxu0 %v1474
        %1488 = vmatpush.bf16.msra.mxu0 %v1473
        %1489 = vmatmul.bf16.gmra.mxu0 %v771
        %v1490 = vpop.f32.mrf.mxu0
        %v1491 = vadd.f32 0.0, %v1490
        %v1492 = vpop.f32.mrf.mxu0
        %v1493 = vadd.f32 0.0, %v1492
        %1494 = vmatmul.bf16.gmra.mxu0 %v772
        %v1495 = vpop.f32.mrf.mxu0
        %v1496 = vadd.f32 0.0, %v1495
        %v1497 = vpop.f32.mrf.mxu0
        %v1498 = vadd.f32 0.0, %v1497
        %1499 = vmatmul.bf16.gmra.mxu0 %v773
        %v1500 = vpop.f32.mrf.mxu0
        %v1501 = vadd.f32 0.0, %v1500
        %v1502 = vpop.f32.mrf.mxu0
        %v1503 = vadd.f32 0.0, %v1502
        %1504 = vmatmul.bf16.gmra.mxu0 %v774
        %v1505 = vpop.f32.mrf.mxu0
        %v1506 = vadd.f32 0.0, %v1505
        %v1507 = vpop.f32.mrf.mxu0
        %v1508 = vadd.f32 0.0, %v1507
        %1509 = vmatmul.bf16.gmra.mxu0 %v775
        %v1510 = vpop.f32.mrf.mxu0
        %v1511 = vadd.f32 0.0, %v1510
        %v1512 = vpop.f32.mrf.mxu0
        %v1513 = vadd.f32 0.0, %v1512
        %1514 = vmatmul.bf16.gmra.mxu0 %v776
        %v1515 = vpop.f32.mrf.mxu0
        %v1516 = vadd.f32 0.0, %v1515
        %v1517 = vpop.f32.mrf.mxu0
        %v1518 = vadd.f32 0.0, %v1517
        %1519 = vmatmul.bf16.gmra.mxu0 %v777
        %v1520 = vpop.f32.mrf.mxu0
        %v1521 = vadd.f32 0.0, %v1520
        %v1522 = vpop.f32.mrf.mxu0
        %v1523 = vadd.f32 0.0, %v1522
        %1524 = vmatmul.bf16.gmra.mxu0 %v778
        %v1525 = vpop.f32.mrf.mxu0
        %v1526 = vadd.f32 0.0, %v1525
        %v1527 = vpop.f32.mrf.mxu0
        %v1528 = vadd.f32 0.0, %v1527
        %1529 = vdwg.mxu0
        %v1530 = vmul.f32 %v1491, %v1413
        %v1531 = vmul.f32 %v1493, %v1414
        %v1532 = vmul.f32 %v1496, %v1415
        %v1533 = vmul.f32 %v1498, %v1416
        %v1534 = vmul.f32 %v1501, %v1417
        %v1535 = vmul.f32 %v1503, %v1418
        %v1536 = vmul.f32 %v1506, %v1419
        %v1537 = vmul.f32 %v1508, %v1420
        %v1538 = vmul.f32 %v1511, %v1421
        %v1539 = vmul.f32 %v1513, %v1422
        %v1540 = vmul.f32 %v1516, %v1423
        %v1541 = vmul.f32 %v1518, %v1424
        %v1542 = vmul.f32 %v1521, %v1425
        %v1543 = vmul.f32 %v1523, %v1426
        %v1544 = vmul.f32 %v1526, %v1427
        %v1545 = vmul.f32 %v1528, %v1428
        %1546 = vmatpush.msra.mxu0 %v1545
        %1547 = vmatpush.msra.mxu0 %v1544
        %1548 = vmatpush.msra.mxu0 %v1543
        %1549 = vmatpush.msra.mxu0 %v1542
        %1550 = vmatpush.msra.mxu0 %v1541
        %1551 = vmatpush.msra.mxu0 %v1540
        %1552 = vmatpush.msra.mxu0 %v1539
        %1553 = vmatpush.msra.mxu0 %v1538
        %1554 = vmatpush.msra.mxu0 %v1537
        %1555 = vmatpush.msra.mxu0 %v1536
        %1556 = vmatpush.msra.mxu0 %v1535
        %1557 = vmatpush.msra.mxu0 %v1534
        %1558 = vmatpush.msra.mxu0 %v1533
        %1559 = vmatpush.msra.mxu0 %v1532
        %1560 = vmatpush.msra.mxu0 %v1531
        %1561 = vmatpush.msra.mxu0 %v1530
        %1562 = vmatmul.f32.gmra.mxu0 %v1472
        %v1563 = vpop.f32.mrf.mxu0
        %v1564 = vadd.f32 0.0, %v1563
        %1565 = vdwg.mxu0
        %1567 = vset.pattern.permute.xlu0 0
        %1568 = vperm.xlu0 %1567, %v504
        %v1569 = vpop.permute.xlu0 %1568
        %1572 = vset.pattern.permute.xlu0 0
        %1573 = vperm.xlu0 %1572, %v505
        %v1574 = vpop.permute.xlu0 %1573
        %1577 = vset.pattern.permute.xlu0 0
        %1578 = vperm.xlu0 %1577, %v506
        %v1579 = vpop.permute.xlu0 %1578
        %1582 = vset.pattern.permute.xlu0 0
        %1583 = vperm.xlu0 %1582, %v507
        %v1584 = vpop.permute.xlu0 %1583
        %1587 = vset.pattern.permute.xlu0 0
        %1588 = vperm.xlu0 %1587, %v508
        %v1589 = vpop.permute.xlu0 %1588
        %1592 = vset.pattern.permute.xlu0 0
        %1593 = vperm.xlu0 %1592, %v509
        %v1594 = vpop.permute.xlu0 %1593
        %1597 = vset.pattern.permute.xlu0 0
        %1598 = vperm.xlu0 %1597, %v510
        %v1599 = vpop.permute.xlu0 %1598
        %1602 = vset.pattern.permute.xlu0 0
        %1603 = vperm.xlu0 %1602, %v511
        %v1604 = vpop.permute.xlu0 %1603
        %1607 = vset.pattern.permute.xlu0 0
        %1608 = vperm.xlu0 %1607, %v512
        %v1609 = vpop.permute.xlu0 %1608
        %1612 = vset.pattern.permute.xlu0 0
        %1613 = vperm.xlu0 %1612, %v513
        %v1614 = vpop.permute.xlu0 %1613
        %1617 = vset.pattern.permute.xlu0 0
        %1618 = vperm.xlu0 %1617, %v514
        %v1619 = vpop.permute.xlu0 %1618
        %1622 = vset.pattern.permute.xlu0 0
        %1623 = vperm.xlu0 %1622, %v515
        %v1624 = vpop.permute.xlu0 %1623
        %1627 = vset.pattern.permute.xlu0 0
        %1628 = vperm.xlu0 %1627, %v516
        %v1629 = vpop.permute.xlu0 %1628
        %1632 = vset.pattern.permute.xlu0 0
        %1633 = vperm.xlu0 %1632, %v517
        %v1634 = vpop.permute.xlu0 %1633
        %1637 = vset.pattern.permute.xlu0 0
        %1638 = vperm.xlu0 %1637, %v518
        %v1639 = vpop.permute.xlu0 %1638
        %1642 = vset.pattern.permute.xlu0 0
        %1643 = vperm.xlu0 %1642, %v519
        %v1644 = vpop.permute.xlu0 %1643
        %v1646 = vmul.f32 %v1413, %v1569
        %v1647 = vmul.f32 %v1414, %v1574
        %v1648 = vmul.f32 %v1415, %v1579
        %v1649 = vmul.f32 %v1416, %v1584
        %v1650 = vmul.f32 %v1417, %v1589
        %v1651 = vmul.f32 %v1418, %v1594
        %v1652 = vmul.f32 %v1419, %v1599
        %v1653 = vmul.f32 %v1420, %v1604
        %v1654 = vmul.f32 %v1421, %v1609
        %v1655 = vmul.f32 %v1422, %v1614
        %v1656 = vmul.f32 %v1423, %v1619
        %v1657 = vmul.f32 %v1424, %v1624
        %v1658 = vmul.f32 %v1425, %v1629
        %v1659 = vmul.f32 %v1426, %v1634
        %v1660 = vmul.f32 %v1427, %v1639
        %v1661 = vmul.f32 %v1428, %v1644
        %1662 = vmatpush.msra.mxu0 %v1661
        %1663 = vmatpush.msra.mxu0 %v1660
        %1664 = vmatpush.msra.mxu0 %v1659
        %1665 = vmatpush.msra.mxu0 %v1658
        %1666 = vmatpush.msra.mxu0 %v1657
        %1667 = vmatpush.msra.mxu0 %v1656
        %1668 = vmatpush.msra.mxu0 %v1655
        %1669 = vmatpush.msra.mxu0 %v1654
        %1670 = vmatpush.msra.mxu0 %v1653
        %1671 = vmatpush.msra.mxu0 %v1652
        %1672 = vmatpush.msra.mxu0 %v1651
        %1673 = vmatpush.msra.mxu0 %v1650
        %1674 = vmatpush.msra.mxu0 %v1649
        %1675 = vmatpush.msra.mxu0 %v1648
        %1676 = vmatpush.msra.mxu0 %v1647
        %1677 = vmatpush.msra.mxu0 %v1646
        %1678 = vmatmul.f32.gmra.mxu0 %v1472
        %v1679 = vpop.f32.mrf.mxu0
        %v1680 = vadd.f32 0.0, %v1679
        %1681 = vdwg.mxu0
        %1682 = vmatpush.msra.mxu0 %v1428
        %1683 = vmatpush.msra.mxu0 %v1427
        %1684 = vmatpush.msra.mxu0 %v1426
        %1685 = vmatpush.msra.mxu0 %v1425
        %1686 = vmatpush.msra.mxu0 %v1424
        %1687 = vmatpush.msra.mxu0 %v1423
        %1688 = vmatpush.msra.mxu0 %v1422
        %1689 = vmatpush.msra.mxu0 %v1421
        %1690 = vmatpush.msra.mxu0 %v1420
        %1691 = vmatpush.msra.mxu0 %v1419
        %1692 = vmatpush.msra.mxu0 %v1418
        %1693 = vmatpush.msra.mxu0 %v1417
        %1694 = vmatpush.msra.mxu0 %v1416
        %1695 = vmatpush.msra.mxu0 %v1415
        %1696 = vmatpush.msra.mxu0 %v1414
        %1697 = vmatpush.msra.mxu0 %v1413
        %1698 = vmatmul.f32.gmra.mxu0 %v1472
        %v1699 = vpop.f32.mrf.mxu0
        %v1700 = vadd.f32 0.0, %v1699
        %1701 = vdwg.mxu0
        %v1702 = vsel %vm1252, %v1564, 0.0
        %1703 = vadd.xlane.f32.xlu0 %v1702
        %v1704 = vpop.xlane.xlu0 %1703
        %v1705 = vsel %vm1252, %v1680, 0.0
        %1706 = vadd.xlane.f32.xlu0 %v1705
        %v1707 = vpop.xlane.xlu0 %1706
        %vm1708 = vcmp.gt.f32.partialorder %v1707, 0.0
        %v1709 = vrcp.pop %v1707
        %v1710 = vmul.f32 %v1707, %v1709
        %v1711 = vsub.f32 1.0, %v1710
        %v1712 = vmul.f32 %v1709, %v1711
        %v1713 = vadd.f32 %v1709, %v1712
        %vm1714 = vweird.f32 %v1707
        %vm1715 = vweird.f32 %v1709
        %vm1716 = vmor %vm1714, %vm1715
        %v1717 = vsel %vm1716, %v1709, %v1713
        %v1718 = vand.u32 2147483647, %v1707
        %vm1719 = vcmp.eq.f32.partialorder %v1718, 8.507059e+37
        %v1720 = vand.u32 %v1707, 2147483648
        %v1721 = vor.u32 1.1754944e-38, %v1720
        %v1722 = vsel %vm1719, %v1721, %v1717
        %v1723 = vmul.f32 1.0, %v1722
        %v1724 = vsel %vm1708, %v1723, 0.0
        %v1725 = vmul.f32 %v1680, %v1680
        %v1726 = vsel %vm1252, %v1725, 0.0
        %1727 = vadd.xlane.f32.xlu0 %v1726
        %v1728 = vpop.xlane.xlu0 %1727
        %v1729 = vmul.f32 %v1728, %v1724
        %v1730 = vsub.f32 %v1729, %v1704
        %v1731 = vmul.f32 %v1730, %v1724
        %v1732 = vmul.f32 %v1700, %v1700
        %v1733 = vsel %vm1252, %v1732, 0.0
        %1734 = vadd.xlane.f32.xlu0 %v1733
        %v1735 = vpop.xlane.xlu0 %1734
        %v1736 = vrsqrt.pop %v1735
        %v1737 = vmul.f32 %v1736, %v1735
        %v1738 = vmul.f32 %v1737, %v1736
        %v1739 = vmul.f32 0.5, %v1738
        %v1740 = vsub.f32 1.5, %v1739
        %v1741 = vmul.f32 %v1736, %v1740
        %v1742 = vmul.f32 %v1735, %v1741
        %vm1743 = vcmp.eq.f32.partialorder %v1735, inf
        %v1744 = vsel %vm1743, %v1735, %v1742
        %vm1745 = vcmp.eq.f32.partialorder %v1735, 0.0
        %v1746 = vand.u32 %v1735, 2147483648
        %v1747 = vsel %vm1745, %v1746, %v1744
        %v1748 = vmul.f32 %v1747, 0.125
        %v1749 = vsub.f32 %v1748, 1.0
        %v1750 = vmul.f32 %v1731, 100.0
        %v1751 = vmul.f32 %v1749, 100.0
        %v1752 = vadd.f32 %v1750, %v1751
        %vm1753 = vcmp.eq.s32.totalorder %v1465, 0
        %v1754 = vsel %vm1753, %v1752, 0.0
        %vm1755 = vcmp.eq.s32.totalorder %v1465, 1
        %v1756 = vsel %vm1755, %v1750, 0.0
        %v1757 = vadd.f32 %v1754, %v1756
        %vm1758 = vcmp.eq.s32.totalorder %v1465, 2
        %v1759 = vsel %vm1758, %v1751, 0.0
        %v1760 = vadd.f32 %v1757, %v1759
        %1761 = vst.msk [vmem:[%s435] sm:$0xff] %vm521, %v1760
        %s1762 = sand.u32 %s267, 1
        %s1763 = scalar_lea.sflag [#allocation3], %s1762
        %s1764 = sand.u32 %s267, 1
        %s1765 = smul.addr %s1764, 4
        %s1766 = scalar_lea.vmem [#allocation2], %s1765
        %s1767 = sand.u32 %s293, 1
        %s1768 = scalar_lea.sflag [#allocation5], %s1767
        %s1769 = sand.u32 %s293, 1
        %s1770 = smul.addr %s1769, 8
        %s1771 = scalar_lea.vmem [#allocation4], %s1770
        // Predicated region
        $region61: #{tpu_custom_call.1} parent=59 // pred_check
          %p1772 = pneg %p277
        $region62: #{tpu_custom_call.1} parent=59 // pred_check_branch
          %1774 = sbr.rel (%p1772) target = $region64
        $region63: #{tpu_custom_call.1} parent=59 // pred_region
          %1776 = vsyncadd %s1763, 0
          %s1777 = smul.addr %s29, 4
          %s1778 = scalar_lea.hbm %s10, %s1777
          %s1780 = sshll.u32 %s1766, 4
          %s1781 = int_to_ptr.vmem [resolvable:$true] %s1780
          %s1782 = sshll.u32 %s1778, 4
          %s1783 = int_to_ptr.hbm [resolvable:$true] %s1782
          %1785 = dma.vmem_to_hbm [thread:$0]  %s1781, 64, %s1783, %s1763
        $region64: #{tpu_custom_call.1} parent=59 // pred_fallthru
          _
        // Predicated region
        $region65: #{tpu_custom_call.1} parent=59 // pred_check
          %p1786 = pneg %p303
        $region66: #{tpu_custom_call.1} parent=59 // pred_check_branch
          %1788 = sbr.rel (%p1786) target = $region68
        $region67: #{tpu_custom_call.1} parent=59 // pred_region
          %1790 = vsyncadd %s1768, 0
          %s1791 = smul.addr %s29, 8
          %s1792 = scalar_lea.hbm %s11, %s1791
          %s1794 = sshll.u32 %s1771, 4
          %s1795 = int_to_ptr.vmem [resolvable:$true] %s1794
          %s1796 = sshll.u32 %s1792, 4
          %s1797 = int_to_ptr.hbm [resolvable:$true] %s1796
          %1799 = dma.vmem_to_hbm [thread:$0]  %s1795, 128, %s1797, %s1768
        $region68: #{tpu_custom_call.1} parent=59 // pred_fallthru
          _
      $region60: #{tpu_custom_call.1} parent=5 // pred_fallthru
        _
      %p1800 = scmp.le.s32.totalorder 2, %s24
      // Predicated region
      $region69: #{tpu_custom_call.1} parent=5 // pred_check
        %p1801 = pneg %p1800
      $region70: #{tpu_custom_call.1} parent=5 // pred_check_branch
        %1803 = sbr.rel (%p1801) target = $region72
      $region71: #{tpu_custom_call.1} parent=5 // pred_region
        %s1804 = ssub.s32 %s24, 2
        // Predicated region
        $region73: #{tpu_custom_call.1} parent=71 // pred_check
          %p1805 = pneg %p283
        $region74: #{tpu_custom_call.1} parent=71 // pred_check_branch
          %1807 = sbr.rel (%p1805) target = $region76
        $region75: #{tpu_custom_call.1} parent=71 // pred_region
          %s1808 = sand.u32 %s268, 1
          %s1809 = scalar_lea.sflag [#allocation3], %s1808
          %s1810 = sand.u32 %s268, 1
          %s1811 = smul.addr %s1810, 4
          %s1812 = scalar_lea.vmem [#allocation2], %s1811
          %1814 = dma.done %s1809, 64
        $region76: #{tpu_custom_call.1} parent=71 // pred_fallthru
          _
        // Predicated region
        $region77: #{tpu_custom_call.1} parent=71 // pred_check
          %p1815 = pneg %p309
        $region78: #{tpu_custom_call.1} parent=71 // pred_check_branch
          %1817 = sbr.rel (%p1815) target = $region80
        $region79: #{tpu_custom_call.1} parent=71 // pred_region
          %s1818 = sand.u32 %s294, 1
          %s1819 = scalar_lea.sflag [#allocation5], %s1818
          %s1820 = sand.u32 %s294, 1
          %s1821 = smul.addr %s1820, 8
          %s1822 = scalar_lea.vmem [#allocation4], %s1821
          %1824 = dma.done %s1819, 128
        $region80: #{tpu_custom_call.1} parent=71 // pred_fallthru
          _
      $region72: #{tpu_custom_call.1} parent=5 // pred_fallthru
        _
    $region6: #{tpu_custom_call.1} parent=1 // loop_footer
      %s28 = sadd.s32 1, %s24
    $region7: #{tpu_custom_call.1} parent=1 // loop_footer_branch
      %23 = sbr.rel target = $region3
    $region8: #{tpu_custom_call.1} parent=1 // loop_exit
      _
    %1825 = vsyncpa [#allocation3], 1
    %s1826 = scalar_lea.sflag [#allocation3], 1
    %1827 = vsyncpa %s1826, 1
    %1828 = vsyncpa [#allocation5], 1
    %s1829 = scalar_lea.sflag [#allocation5], 1
    %1830 = vsyncpa %s1829, 1

</llo_original>
